<compile_context>
chip_gen: v7x
topology: tpu7x:2x2x1
jax: 0.10.0
libtpu: 0.0.40
codegen_flags: <defaults>
</compile_context>

<pallas_src>
import functools

import jax
import jax.numpy as jnp
from jax import lax
from jax.experimental import pallas as pl
from jax.experimental.pallas import tpu as pltpu

_LANE = 128
_SUBLANE = 8
_VMEM_BUDGET = 20 * 1024 * 1024  # conservative: headroom inside v7x's 32 MiB scoped VMEM


def _pair(v):
    return (v, v) if isinstance(v, int) else tuple(v)


def _block_vmem_bytes(shape, dtype):
    """Approximate VMEM footprint of one block (last two dims padded to (8,128) tiles)."""
    shape = tuple(shape)
    if len(shape) < 2:
        shape = (1,) * (2 - len(shape)) + shape
    *lead, s, l = shape
    s_pad = -(-s // _SUBLANE) * _SUBLANE
    l_pad = -(-l // _LANE) * _LANE
    n = 1
    for d in lead:
        n *= d
    return n * s_pad * l_pad * jnp.dtype(dtype).itemsize


def _conv2d_kernel(x_ref, w_ref, b_ref, o_ref, *scratch, KH, KW, TH, WO, SH, SW,
                   DH, DW, Cin, Cout_pad, fuse_taps):
    """One (batch, output-row-tile) program.

    x_ref  : (1, rows_in, Wp, Cin)          haloed input row tile (compute dtype)
    w_ref  : fused  -> (KH*KW*Cin, Cout_pad)
             per-tap-> (KH*KW, Cin, Cout_pad)
    b_ref  : (1, Cout_pad)                  f32 bias
    o_ref  : (1, TH, WO, Cout_pad)          output tile (lane-dense: Cout_pad % 128 == 0)
    scratch: fused  -> [(TH*WO, KH*KW*Cin) im2col buffer, compute dtype]
             per-tap-> [(TH*WO, Cout_pad)  f32 accumulator]
    """
    # Gather the KH*KW input patches for this tile (static, fully unrolled taps).
    patches = []
    for kh in range(KH):
        # Rows for this tap: local output row t -> local input row t*SH + kh*DH.
        slab = x_ref[0, kh * DH: kh * DH + (TH - 1) * SH + 1]   # ((TH-1)*SH+1, Wp, Cin)
        if SH > 1:
            slab = slab[::SH]                                   # (TH, Wp, Cin)
        for kw in range(KW):
            patch = slab[:, kw * DW: kw * DW + (WO - 1) * SW + 1: SW, :]  # (TH, WO, Cin)
            patches.append(patch.reshape(TH * WO, Cin))

    if fuse_taps:
        # Cin is lane-aligned: assemble im2col lhs with aligned column stores, then a
        # single MXU contraction with K = KH*KW*Cin (1 matmul, 1 output store).
        lhs_ref = scratch[0]
        for t, patch in enumerate(patches):
            lhs_ref[:, t * Cin:(t + 1) * Cin] = patch
        out = jnp.dot(lhs_ref[...], w_ref[...],
                      preferred_element_type=jnp.float32)       # (TH*WO, Cout_pad) f32
        out = out + b_ref[...]
        o_ref[0] = out.reshape(TH, WO, Cout_pad).astype(o_ref.dtype)
    else:
        acc_ref = scratch[0]                                    # (TH*WO, Cout_pad) f32
        for t, lhs in enumerate(patches):
            contrib = jnp.dot(lhs, w_ref[t],
                              preferred_element_type=jnp.float32)   # MXU, f32 acc
            if t == 0:
                acc_ref[...] = contrib
            else:
                acc_ref[...] += contrib
        out = acc_ref[...] + b_ref[...]                         # (TH*WO, Cout_pad), f32
        o_ref[0] = out.reshape(TH, WO, Cout_pad).astype(o_ref.dtype)


def conv2d_nhwc_pallas(x_nhwc, w_hwio, bias=None, *, stride=1, padding=0,
                       dilation=1, groups=1, row_tile=None,
                       compute_dtype=jnp.bfloat16):
    """Conv2d on NHWC activations / HWIO weights (TPU-native layout). Returns NHWC."""
    if groups != 1:
        raise NotImplementedError("groups != 1")  # TODO(synk): grouped/depthwise conv
    sh, sw = _pair(stride)
    ph, pw = _pair(padding)
    dh, dw = _pair(dilation)

    N, H, W, Cin = x_nhwc.shape
    KH, KW, Cin_w, Cout = w_hwio.shape
    assert Cin_w == Cin, (Cin_w, Cin)
    out_dtype = x_nhwc.dtype
    cdt = jnp.dtype(compute_dtype)

    Hp, Wp = H + 2 * ph, W + 2 * pw
    HO = (Hp - dh * (KH - 1) - 1) // sh + 1
    WO = (Wp - dw * (KW - 1) - 1) // sw + 1
    assert HO > 0 and WO > 0
    Cout_pad = -(-Cout // _LANE) * _LANE        # lane-dense output / accumulator
    fuse_taps = (Cin % _LANE == 0)              # lane-aligned im2col -> single matmul

    def vmem_estimate(th):
        rows_in_ = (th - 1) * sh + dh * (KH - 1) + 1
        est = (2 * _block_vmem_bytes((rows_in_, Wp, Cin), cdt)           # input (dbl-buffered)
               + 2 * _block_vmem_bytes((th, WO, Cout_pad), out_dtype)    # output (dbl-buffered)
               + _block_vmem_bytes((1, Cout_pad), jnp.float32))          # bias
        if fuse_taps:
            est += _block_vmem_bytes((KH * KW * Cin, Cout_pad), cdt)     # weights
            est += _block_vmem_bytes((th * WO, KH * KW * Cin), cdt)      # im2col lhs
            est += _block_vmem_bytes((th * WO, Cout_pad), jnp.float32)   # matmul result
        else:
            est += _block_vmem_bytes((KH * KW, Cin, Cout_pad), cdt)      # weights
            est += _block_vmem_bytes((th * WO, Cout_pad), jnp.float32)   # accumulator
        return est

    if row_tile is None:
        # Target an MXU M-dim (TH*WO) of ~512 rows, re-derived per call against the
        # VMEM budget (so the same code also fits v7x's smaller VMEM).
        TH = max(1, min(HO, pl.cdiv(512, WO)))
        while TH > 1 and vmem_estimate(TH) > _VMEM_BUDGET:
            TH = pl.cdiv(TH, 2)
    else:
        TH = max(1, min(int(row_tile), HO))

    n_t = pl.cdiv(HO, TH)
    HO_pad = n_t * TH
    rows_in = (TH - 1) * sh + dh * (KH - 1) + 1

    # ---- HBM-side prep: one materialization of the haloed row tiles (pad fuses in). ----
    x = x_nhwc.astype(cdt)
    xp = jnp.pad(x, ((0, 0), (ph, ph), (pw, pw), (0, 0)))
    # Overlapping (haloed) row windows per output-row tile; clamped indices only feed
    # padded output rows, which are sliced off below.
    row_idx = jnp.minimum(
        jnp.arange(n_t, dtype=jnp.int32)[:, None] * (TH * sh)
        + jnp.arange(rows_in, dtype=jnp.int32)[None, :],
        Hp - 1)
    x_tiles = xp[:, row_idx]                                  # (N, n_t, rows_in, Wp, Cin)
    x_tiles = x_tiles.reshape(N * n_t, rows_in, Wp, Cin)

    w = w_hwio.astype(cdt)
    if Cout_pad != Cout:
        w = jnp.pad(w, ((0, 0), (0, 0), (0, 0), (0, Cout_pad - Cout)))
    if fuse_taps:
        w = w.reshape(KH * KW * Cin, Cout_pad)
        w_spec = pl.BlockSpec((KH * KW * Cin, Cout_pad), lambda n, r: (0, 0))
        scratch_shapes = [pltpu.VMEM((TH * WO, KH * KW * Cin), cdt)]
    else:
        w = w.reshape(KH * KW, Cin, Cout_pad)
        w_spec = pl.BlockSpec((KH * KW, Cin, Cout_pad), lambda n, r: (0, 0, 0))
        scratch_shapes = [pltpu.VMEM((TH * WO, Cout_pad), jnp.float32)]

    if bias is None:
        b = jnp.zeros((1, Cout_pad), jnp.float32)
    else:
        b = jnp.pad(bias.astype(jnp.float32), (0, Cout_pad - Cout)).reshape(1, Cout_pad)

    kernel = functools.partial(
        _conv2d_kernel, KH=KH, KW=KW, TH=TH, WO=WO, SH=sh, SW=sw, DH=dh, DW=dw,
        Cin=Cin, Cout_pad=Cout_pad, fuse_taps=fuse_taps)

    vmem_limit = int(min(64 * 1024 * 1024,
                         max(2 * vmem_estimate(TH), 16 * 1024 * 1024)))

    out = pl.pallas_call(
        kernel,
        out_shape=jax.ShapeDtypeStruct((N, HO_pad, WO, Cout_pad), out_dtype),
        grid=(N, n_t),
        in_specs=[
            pl.BlockSpec((1, rows_in, Wp, Cin), lambda n, r: (n * n_t + r, 0, 0, 0)),
            w_spec,
            pl.BlockSpec((1, Cout_pad), lambda n, r: (0, 0)),
        ],
        out_specs=pl.BlockSpec((1, TH, WO, Cout_pad), lambda n, r: (n, r, 0, 0)),
        scratch_shapes=scratch_shapes,
        compiler_params=pltpu.CompilerParams(
            dimension_semantics=("parallel", "parallel"),
            vmem_limit_bytes=vmem_limit),
    )(x_tiles, w, b)

    # Drop padded output rows and padded channels.
    return out[:, :HO, :, :Cout]


def conv2d_pallas(x_nchw, weight_oihw, bias=None, *, stride=1, padding=0,
                  dilation=1, groups=1, row_tile=None, compute_dtype=jnp.bfloat16):
    """Matches torch.nn.Conv2d(...).forward(x) semantics (NCHW in/out, OIHW weights)."""
    # Layout glue only; chained conv stacks should stay NHWC and call
    # conv2d_nhwc_pallas with pre-transposed HWIO weights.
    x_nhwc = jnp.transpose(x_nchw, (0, 2, 3, 1))
    w_hwio = jnp.transpose(weight_oihw, (2, 3, 1, 0))
    out_nhwc = conv2d_nhwc_pallas(x_nhwc, w_hwio, bias, stride=stride,
                                  padding=padding, dilation=dilation, groups=groups,
                                  row_tile=row_tile, compute_dtype=compute_dtype)
    return jnp.transpose(out_nhwc, (0, 3, 1, 2))


if __name__ == "__main__":
    # Small shapes consistent with Conv2d(in_channels=4, out_channels=8, kernel_size=3).
    N, Cin, H, W = 2, 4, 16, 16
    Cout, K = 8, 3

    key = jax.random.PRNGKey(0)
    kx, kwt, kb, kx3, kw3, kb3 = jax.random.split(key, 6)
    x = jax.random.normal(kx, (N, Cin, H, W), dtype=jnp.float32)

    # PyTorch-like init: U(-1/sqrt(fan_in), 1/sqrt(fan_in)).
    fan_in = Cin * K * K
    bound = 1.0 / (fan_in ** 0.5)
    weight = jax.random.uniform(kwt, (Cout, Cin, K, K), jnp.float32, -bound, bound)
    bias = jax.random.uniform(kb, (Cout,), jnp.float32, -bound, bound)

    # --- Test 1: per-tap path, bf16 MXU, stride=1/pad=1, multi row-tile (TH=6 -> 3 tiles). ---
    out1 = conv2d_pallas(x, weight, bias, stride=1, padding=1, dilation=1,
                         row_tile=6, compute_dtype=jnp.bfloat16)
    out1 = jax.block_until_ready(out1)
    ref1 = lax.conv_general_dilated(
        x.astype(jnp.bfloat16), weight.astype(jnp.bfloat16),
        window_strides=(1, 1), padding=((1, 1), (1, 1)), rhs_dilation=(1, 1),
        dimension_numbers=("NCHW", "OIHW", "NCHW"),
        preferred_element_type=jnp.float32) + bias.reshape(1, Cout, 1, 1)
    assert out1.shape == ref1.shape, (out1.shape, ref1.shape)
    assert jnp.allclose(out1, ref1, atol=2e-2, rtol=2e-2), float(
        jnp.max(jnp.abs(out1 - ref1)))

    # --- Test 2: per-tap path, f32, stride=2/pad=2/dilation=2, non-dividing tile (TH=3). ---
    out2 = conv2d_pallas(x, weight, bias, stride=2, padding=2, dilation=2,
                         row_tile=3, compute_dtype=jnp.float32)
    out2 = jax.block_until_ready(out2)
    ref2 = lax.conv_general_dilated(
        x, weight, window_strides=(2, 2), padding=((2, 2), (2, 2)),
        rhs_dilation=(2, 2), dimension_numbers=("NCHW", "OIHW", "NCHW"),
    ) + bias.reshape(1, Cout, 1, 1)
    assert out2.shape == ref2.shape, (out2.shape, ref2.shape)
    assert jnp.allclose(out2, ref2, atol=2e-3, rtol=2e-3), float(
        jnp.max(jnp.abs(out2 - ref2)))

    # --- Test 3: fused-K path (Cin=128 lane-aligned -> single MXU contraction). ---
    N3, Cin3, H3, W3, Cout3, K3 = 1, 128, 8, 8, 16, 3
    x3 = jax.random.normal(kx3, (N3, Cin3, H3, W3), dtype=jnp.float32)
    fan_in3 = Cin3 * K3 * K3
    bound3 = 1.0 / (fan_in3 ** 0.5)
    w3 = jax.random.uniform(kw3, (Cout3, Cin3, K3, K3), jnp.float32, -bound3, bound3)
    b3 = jax.random.uniform(kb3, (Cout3,), jnp.float32, -bound3, bound3)
    out3 = conv2d_pallas(x3, w3, b3, stride=1, padding=1, dilation=1,
                         compute_dtype=jnp.bfloat16)
    out3 = jax.block_until_ready(out3)
    ref3 = lax.conv_general_dilated(
        x3.astype(jnp.bfloat16), w3.astype(jnp.bfloat16),
        window_strides=(1, 1), padding=((1, 1), (1, 1)), rhs_dilation=(1, 1),
        dimension_numbers=("NCHW", "OIHW", "NCHW"),
        preferred_element_type=jnp.float32) + b3.reshape(1, Cout3, 1, 1)
    assert out3.shape == ref3.shape, (out3.shape, ref3.shape)
    assert jnp.allclose(out3, ref3, atol=2e-2, rtol=2e-2), float(
        jnp.max(jnp.abs(out3 - ref3)))

    print("KERNEL_OK")
</pallas_src>

<mosaic_0001>
module attributes {stable_mosaic.version = 11 : i64} {
  func.func @_conv2d_kernel(%arg0: i32, %arg1: i32, %arg2: memref<1x8x18x4xbf16, #tpu.memory_space<vmem>>, %arg3: memref<9x4x128xbf16, #tpu.memory_space<vmem>>, %arg4: memref<1x128xf32, #tpu.memory_space<vmem>>, %arg5: memref<1x6x16x128xf32, #tpu.memory_space<vmem>>, %arg6: memref<96x128xf32, #tpu.memory_space<vmem>>) attributes {dimension_semantics = [#tpu.dimension_semantics<parallel>, #tpu.dimension_semantics<parallel>], iteration_bounds = array<i64: 2, 3>, scalar_prefetch = 0 : i64, scratch_operands = 1 : i64, tpu.core_type = #tpu.core_type<tc>, window_params = [{transform_indices = @transform_0, window_bounds = array<i64: 1, 8, 18, 4>}, {pipeline_mode = #tpu.pipeline_mode<synchronous>, transform_indices = @transform_1, window_bounds = array<i64: 9, 4, 128>}, {pipeline_mode = #tpu.pipeline_mode<synchronous>, transform_indices = @transform_2, window_bounds = array<i64: 1, 128>}, {transform_indices = @transform_3, window_bounds = array<i64: 1, 6, 16, 128>}]} {
    %c0 = arith.constant 0 : index
    %c0_0 = arith.constant 0 : index
    %c0_1 = arith.constant 0 : index
    %c0_2 = arith.constant 0 : index
    %0 = vector.load %arg2[%c0, %c0_0, %c0_1, %c0_2] : memref<1x8x18x4xbf16, #tpu.memory_space<vmem>>, vector<1x6x18x4xbf16>
    %1 = vector.shape_cast %0 : vector<1x6x18x4xbf16> to vector<6x18x4xbf16>
    %2 = vector.extract_strided_slice %1 {offsets = [0, 0, 0], sizes = [6, 16, 4], strides = [1, 1, 1]} : vector<6x18x4xbf16> to vector<6x16x4xbf16>
    %3 = vector.shape_cast %2 : vector<6x16x4xbf16> to vector<96x4xbf16>
    %4 = vector.extract_strided_slice %1 {offsets = [0, 1, 0], sizes = [6, 16, 4], strides = [1, 1, 1]} : vector<6x18x4xbf16> to vector<6x16x4xbf16>
    %5 = vector.shape_cast %4 : vector<6x16x4xbf16> to vector<96x4xbf16>
    %6 = vector.extract_strided_slice %1 {offsets = [0, 2, 0], sizes = [6, 16, 4], strides = [1, 1, 1]} : vector<6x18x4xbf16> to vector<6x16x4xbf16>
    %7 = vector.shape_cast %6 : vector<6x16x4xbf16> to vector<96x4xbf16>
    %c0_3 = arith.constant 0 : index
    %c1 = arith.constant 1 : index
    %c0_4 = arith.constant 0 : index
    %c0_5 = arith.constant 0 : index
    %8 = vector.load %arg2[%c0_3, %c1, %c0_4, %c0_5] : memref<1x8x18x4xbf16, #tpu.memory_space<vmem>>, vector<1x6x18x4xbf16>
    %9 = vector.shape_cast %8 : vector<1x6x18x4xbf16> to vector<6x18x4xbf16>
    %10 = vector.extract_strided_slice %9 {offsets = [0, 0, 0], sizes = [6, 16, 4], strides = [1, 1, 1]} : vector<6x18x4xbf16> to vector<6x16x4xbf16>
    %11 = vector.shape_cast %10 : vector<6x16x4xbf16> to vector<96x4xbf16>
    %12 = vector.extract_strided_slice %9 {offsets = [0, 1, 0], sizes = [6, 16, 4], strides = [1, 1, 1]} : vector<6x18x4xbf16> to vector<6x16x4xbf16>
    %13 = vector.shape_cast %12 : vector<6x16x4xbf16> to vector<96x4xbf16>
    %14 = vector.extract_strided_slice %9 {offsets = [0, 2, 0], sizes = [6, 16, 4], strides = [1, 1, 1]} : vector<6x18x4xbf16> to vector<6x16x4xbf16>
    %15 = vector.shape_cast %14 : vector<6x16x4xbf16> to vector<96x4xbf16>
    %c0_6 = arith.constant 0 : index
    %c2 = arith.constant 2 : index
    %c0_7 = arith.constant 0 : index
    %c0_8 = arith.constant 0 : index
    %16 = vector.load %arg2[%c0_6, %c2, %c0_7, %c0_8] : memref<1x8x18x4xbf16, #tpu.memory_space<vmem>>, vector<1x6x18x4xbf16>
    %17 = vector.shape_cast %16 : vector<1x6x18x4xbf16> to vector<6x18x4xbf16>
    %18 = vector.extract_strided_slice %17 {offsets = [0, 0, 0], sizes = [6, 16, 4], strides = [1, 1, 1]} : vector<6x18x4xbf16> to vector<6x16x4xbf16>
    %19 = vector.shape_cast %18 : vector<6x16x4xbf16> to vector<96x4xbf16>
    %20 = vector.extract_strided_slice %17 {offsets = [0, 1, 0], sizes = [6, 16, 4], strides = [1, 1, 1]} : vector<6x18x4xbf16> to vector<6x16x4xbf16>
    %21 = vector.shape_cast %20 : vector<6x16x4xbf16> to vector<96x4xbf16>
    %22 = vector.extract_strided_slice %17 {offsets = [0, 2, 0], sizes = [6, 16, 4], strides = [1, 1, 1]} : vector<6x18x4xbf16> to vector<6x16x4xbf16>
    %23 = vector.shape_cast %22 : vector<6x16x4xbf16> to vector<96x4xbf16>
    %c0_9 = arith.constant 0 : index
    %c0_10 = arith.constant 0 : index
    %c0_11 = arith.constant 0 : index
    %24 = vector.load %arg3[%c0_9, %c0_10, %c0_11] : memref<9x4x128xbf16, #tpu.memory_space<vmem>>, vector<1x4x128xbf16>
    %25 = vector.shape_cast %24 : vector<1x4x128xbf16> to vector<4x128xbf16>
    %cst = arith.constant dense<0.000000e+00> : vector<96x128xf32>
    %26 = tpu.matmul %3, %25, %cst {dimension_numbers = #tpu.dot_dimension_numbers<[1], [0], [0], [1], [0, 0, 1, 1], [], []>} : vector<96x4xbf16>, vector<4x128xbf16>, vector<96x128xf32> -> vector<96x128xf32>
    %c0_12 = arith.constant 0 : index
    %c0_13 = arith.constant 0 : index
    %27 = vector.load %arg6[%c0_12, %c0_13] : memref<96x128xf32, #tpu.memory_space<vmem>>, vector<96x128xf32>
    tpu.vector_store %arg6[%c0_12, %c0_13], %26 {strides = array<i32>} : memref<96x128xf32, #tpu.memory_space<vmem>>, vector<96x128xf32>,
    %c1_14 = arith.constant 1 : index
    %c0_15 = arith.constant 0 : index
    %c0_16 = arith.constant 0 : index
    %28 = vector.load %arg3[%c1_14, %c0_15, %c0_16] : memref<9x4x128xbf16, #tpu.memory_space<vmem>>, vector<1x4x128xbf16>
    %29 = vector.shape_cast %28 : vector<1x4x128xbf16> to vector<4x128xbf16>
    %cst_17 = arith.constant dense<0.000000e+00> : vector<96x128xf32>
    %30 = tpu.matmul %5, %29, %cst_17 {dimension_numbers = #tpu.dot_dimension_numbers<[1], [0], [0], [1], [0, 0, 1, 1], [], []>} : vector<96x4xbf16>, vector<4x128xbf16>, vector<96x128xf32> -> vector<96x128xf32>
    %c0_18 = arith.constant 0 : index
    %c0_19 = arith.constant 0 : index
    %31 = vector.load %arg6[%c0_18, %c0_19] : memref<96x128xf32, #tpu.memory_space<vmem>>, vector<96x128xf32>
    %32 = arith.addf %31, %30 : vector<96x128xf32>
    %c0_20 = arith.constant 0 : index
    %c0_21 = arith.constant 0 : index
    %33 = vector.load %arg6[%c0_20, %c0_21] : memref<96x128xf32, #tpu.memory_space<vmem>>, vector<96x128xf32>
    tpu.vector_store %arg6[%c0_20, %c0_21], %32 {strides = array<i32>} : memref<96x128xf32, #tpu.memory_space<vmem>>, vector<96x128xf32>,
    %c2_22 = arith.constant 2 : index
    %c0_23 = arith.constant 0 : index
    %c0_24 = arith.constant 0 : index
    %34 = vector.load %arg3[%c2_22, %c0_23, %c0_24] : memref<9x4x128xbf16, #tpu.memory_space<vmem>>, vector<1x4x128xbf16>
    %35 = vector.shape_cast %34 : vector<1x4x128xbf16> to vector<4x128xbf16>
    %cst_25 = arith.constant dense<0.000000e+00> : vector<96x128xf32>
    %36 = tpu.matmul %7, %35, %cst_25 {dimension_numbers = #tpu.dot_dimension_numbers<[1], [0], [0], [1], [0, 0, 1, 1], [], []>} : vector<96x4xbf16>, vector<4x128xbf16>, vector<96x128xf32> -> vector<96x128xf32>
    %c0_26 = arith.constant 0 : index
    %c0_27 = arith.constant 0 : index
    %37 = vector.load %arg6[%c0_26, %c0_27] : memref<96x128xf32, #tpu.memory_space<vmem>>, vector<96x128xf32>
    %38 = arith.addf %37, %36 : vector<96x128xf32>
    %c0_28 = arith.constant 0 : index
    %c0_29 = arith.constant 0 : index
    %39 = vector.load %arg6[%c0_28, %c0_29] : memref<96x128xf32, #tpu.memory_space<vmem>>, vector<96x128xf32>
    tpu.vector_store %arg6[%c0_28, %c0_29], %38 {strides = array<i32>} : memref<96x128xf32, #tpu.memory_space<vmem>>, vector<96x128xf32>,
    %c3 = arith.constant 3 : index
    %c0_30 = arith.constant 0 : index
    %c0_31 = arith.constant 0 : index
    %40 = vector.load %arg3[%c3, %c0_30, %c0_31] : memref<9x4x128xbf16, #tpu.memory_space<vmem>>, vector<1x4x128xbf16>
    %41 = vector.shape_cast %40 : vector<1x4x128xbf16> to vector<4x128xbf16>
    %cst_32 = arith.constant dense<0.000000e+00> : vector<96x128xf32>
    %42 = tpu.matmul %11, %41, %cst_32 {dimension_numbers = #tpu.dot_dimension_numbers<[1], [0], [0], [1], [0, 0, 1, 1], [], []>} : vector<96x4xbf16>, vector<4x128xbf16>, vector<96x128xf32> -> vector<96x128xf32>
    %c0_33 = arith.constant 0 : index
    %c0_34 = arith.constant 0 : index
    %43 = vector.load %arg6[%c0_33, %c0_34] : memref<96x128xf32, #tpu.memory_space<vmem>>, vector<96x128xf32>
    %44 = arith.addf %43, %42 : vector<96x128xf32>
    %c0_35 = arith.constant 0 : index
    %c0_36 = arith.constant 0 : index
    %45 = vector.load %arg6[%c0_35, %c0_36] : memref<96x128xf32, #tpu.memory_space<vmem>>, vector<96x128xf32>
    tpu.vector_store %arg6[%c0_35, %c0_36], %44 {strides = array<i32>} : memref<96x128xf32, #tpu.memory_space<vmem>>, vector<96x128xf32>,
    %c4 = arith.constant 4 : index
    %c0_37 = arith.constant 0 : index
    %c0_38 = arith.constant 0 : index
    %46 = vector.load %arg3[%c4, %c0_37, %c0_38] : memref<9x4x128xbf16, #tpu.memory_space<vmem>>, vector<1x4x128xbf16>
    %47 = vector.shape_cast %46 : vector<1x4x128xbf16> to vector<4x128xbf16>
    %cst_39 = arith.constant dense<0.000000e+00> : vector<96x128xf32>
    %48 = tpu.matmul %13, %47, %cst_39 {dimension_numbers = #tpu.dot_dimension_numbers<[1], [0], [0], [1], [0, 0, 1, 1], [], []>} : vector<96x4xbf16>, vector<4x128xbf16>, vector<96x128xf32> -> vector<96x128xf32>
    %c0_40 = arith.constant 0 : index
    %c0_41 = arith.constant 0 : index
    %49 = vector.load %arg6[%c0_40, %c0_41] : memref<96x128xf32, #tpu.memory_space<vmem>>, vector<96x128xf32>
    %50 = arith.addf %49, %48 : vector<96x128xf32>
    %c0_42 = arith.constant 0 : index
    %c0_43 = arith.constant 0 : index
    %51 = vector.load %arg6[%c0_42, %c0_43] : memref<96x128xf32, #tpu.memory_space<vmem>>, vector<96x128xf32>
    tpu.vector_store %arg6[%c0_42, %c0_43], %50 {strides = array<i32>} : memref<96x128xf32, #tpu.memory_space<vmem>>, vector<96x128xf32>,
    %c5 = arith.constant 5 : index
    %c0_44 = arith.constant 0 : index
    %c0_45 = arith.constant 0 : index
    %52 = vector.load %arg3[%c5, %c0_44, %c0_45] : memref<9x4x128xbf16, #tpu.memory_space<vmem>>, vector<1x4x128xbf16>
    %53 = vector.shape_cast %52 : vector<1x4x128xbf16> to vector<4x128xbf16>
    %cst_46 = arith.constant dense<0.000000e+00> : vector<96x128xf32>
    %54 = tpu.matmul %15, %53, %cst_46 {dimension_numbers = #tpu.dot_dimension_numbers<[1], [0], [0], [1], [0, 0, 1, 1], [], []>} : vector<96x4xbf16>, vector<4x128xbf16>, vector<96x128xf32> -> vector<96x128xf32>
    %c0_47 = arith.constant 0 : index
    %c0_48 = arith.constant 0 : index
    %55 = vector.load %arg6[%c0_47, %c0_48] : memref<96x128xf32, #tpu.memory_space<vmem>>, vector<96x128xf32>
    %56 = arith.addf %55, %54 : vector<96x128xf32>
    %c0_49 = arith.constant 0 : index
    %c0_50 = arith.constant 0 : index
    %57 = vector.load %arg6[%c0_49, %c0_50] : memref<96x128xf32, #tpu.memory_space<vmem>>, vector<96x128xf32>
    tpu.vector_store %arg6[%c0_49, %c0_50], %56 {strides = array<i32>} : memref<96x128xf32, #tpu.memory_space<vmem>>, vector<96x128xf32>,
    %c6 = arith.constant 6 : index
    %c0_51 = arith.constant 0 : index
    %c0_52 = arith.constant 0 : index
    %58 = vector.load %arg3[%c6, %c0_51, %c0_52] : memref<9x4x128xbf16, #tpu.memory_space<vmem>>, vector<1x4x128xbf16>
    %59 = vector.shape_cast %58 : vector<1x4x128xbf16> to vector<4x128xbf16>
    %cst_53 = arith.constant dense<0.000000e+00> : vector<96x128xf32>
    %60 = tpu.matmul %19, %59, %cst_53 {dimension_numbers = #tpu.dot_dimension_numbers<[1], [0], [0], [1], [0, 0, 1, 1], [], []>} : vector<96x4xbf16>, vector<4x128xbf16>, vector<96x128xf32> -> vector<96x128xf32>
    %c0_54 = arith.constant 0 : index
    %c0_55 = arith.constant 0 : index
    %61 = vector.load %arg6[%c0_54, %c0_55] : memref<96x128xf32, #tpu.memory_space<vmem>>, vector<96x128xf32>
    %62 = arith.addf %61, %60 : vector<96x128xf32>
    %c0_56 = arith.constant 0 : index
    %c0_57 = arith.constant 0 : index
    %63 = vector.load %arg6[%c0_56, %c0_57] : memref<96x128xf32, #tpu.memory_space<vmem>>, vector<96x128xf32>
    tpu.vector_store %arg6[%c0_56, %c0_57], %62 {strides = array<i32>} : memref<96x128xf32, #tpu.memory_space<vmem>>, vector<96x128xf32>,
    %c7 = arith.constant 7 : index
    %c0_58 = arith.constant 0 : index
    %c0_59 = arith.constant 0 : index
    %64 = vector.load %arg3[%c7, %c0_58, %c0_59] : memref<9x4x128xbf16, #tpu.memory_space<vmem>>, vector<1x4x128xbf16>
    %65 = vector.shape_cast %64 : vector<1x4x128xbf16> to vector<4x128xbf16>
    %cst_60 = arith.constant dense<0.000000e+00> : vector<96x128xf32>
    %66 = tpu.matmul %21, %65, %cst_60 {dimension_numbers = #tpu.dot_dimension_numbers<[1], [0], [0], [1], [0, 0, 1, 1], [], []>} : vector<96x4xbf16>, vector<4x128xbf16>, vector<96x128xf32> -> vector<96x128xf32>
    %c0_61 = arith.constant 0 : index
    %c0_62 = arith.constant 0 : index
    %67 = vector.load %arg6[%c0_61, %c0_62] : memref<96x128xf32, #tpu.memory_space<vmem>>, vector<96x128xf32>
    %68 = arith.addf %67, %66 : vector<96x128xf32>
    %c0_63 = arith.constant 0 : index
    %c0_64 = arith.constant 0 : index
    %69 = vector.load %arg6[%c0_63, %c0_64] : memref<96x128xf32, #tpu.memory_space<vmem>>, vector<96x128xf32>
    tpu.vector_store %arg6[%c0_63, %c0_64], %68 {strides = array<i32>} : memref<96x128xf32, #tpu.memory_space<vmem>>, vector<96x128xf32>,
    %c8 = arith.constant 8 : index
    %c0_65 = arith.constant 0 : index
    %c0_66 = arith.constant 0 : index
    %70 = vector.load %arg3[%c8, %c0_65, %c0_66] : memref<9x4x128xbf16, #tpu.memory_space<vmem>>, vector<1x4x128xbf16>
    %71 = vector.shape_cast %70 : vector<1x4x128xbf16> to vector<4x128xbf16>
    %cst_67 = arith.constant dense<0.000000e+00> : vector<96x128xf32>
    %72 = tpu.matmul %23, %71, %cst_67 {dimension_numbers = #tpu.dot_dimension_numbers<[1], [0], [0], [1], [0, 0, 1, 1], [], []>} : vector<96x4xbf16>, vector<4x128xbf16>, vector<96x128xf32> -> vector<96x128xf32>
    %c0_68 = arith.constant 0 : index
    %c0_69 = arith.constant 0 : index
    %73 = vector.load %arg6[%c0_68, %c0_69] : memref<96x128xf32, #tpu.memory_space<vmem>>, vector<96x128xf32>
    %74 = arith.addf %73, %72 : vector<96x128xf32>
    %c0_70 = arith.constant 0 : index
    %c0_71 = arith.constant 0 : index
    %75 = vector.load %arg6[%c0_70, %c0_71] : memref<96x128xf32, #tpu.memory_space<vmem>>, vector<96x128xf32>
    tpu.vector_store %arg6[%c0_70, %c0_71], %74 {strides = array<i32>} : memref<96x128xf32, #tpu.memory_space<vmem>>, vector<96x128xf32>,
    %c0_72 = arith.constant 0 : index
    %c0_73 = arith.constant 0 : index
    %76 = vector.load %arg6[%c0_72, %c0_73] : memref<96x128xf32, #tpu.memory_space<vmem>>, vector<96x128xf32>
    %c0_74 = arith.constant 0 : index
    %c0_75 = arith.constant 0 : index
    %77 = vector.load %arg4[%c0_74, %c0_75] : memref<1x128xf32, #tpu.memory_space<vmem>>, vector<1x128xf32>
    %78 = vector.broadcast %77 : vector<1x128xf32> to vector<96x128xf32>
    %79 = arith.addf %76, %78 : vector<96x128xf32>
    %80 = vector.shape_cast %79 : vector<96x128xf32> to vector<6x16x128xf32>
    %c0_76 = arith.constant 0 : index
    %c0_77 = arith.constant 0 : index
    %c0_78 = arith.constant 0 : index
    %c0_79 = arith.constant 0 : index
    %81 = vector.load %arg5[%c0_76, %c0_77, %c0_78, %c0_79] : memref<1x6x16x128xf32, #tpu.memory_space<vmem>>, vector<1x6x16x128xf32>
    %82 = vector.shape_cast %81 : vector<1x6x16x128xf32> to vector<6x16x128xf32>
    %83 = vector.shape_cast %80 : vector<6x16x128xf32> to vector<1x6x16x128xf32>
    tpu.vector_store %arg5[%c0_76, %c0_77, %c0_78, %c0_79], %83 {strides = array<i32>} : memref<1x6x16x128xf32, #tpu.memory_space<vmem>>, vector<1x6x16x128xf32>,
    return
  }
  func.func @transform_0(%arg0: i32, %arg1: i32) -> (i32, i32, i32, i32) {
    %c3_i32 = arith.constant 3 : i32
    %0 = arith.muli %arg0, %c3_i32 : i32
    %1 = arith.addi %0, %arg1 : i32
    %c0_i32 = arith.constant 0 : i32
    %c0_i32_0 = arith.constant 0 : i32
    %c0_i32_1 = arith.constant 0 : i32
    %c0_i32_2 = arith.constant 0 : i32
    return %1, %c0_i32, %c0_i32_0, %c0_i32_1 : i32, i32, i32, i32
  }
  func.func @transform_1(%arg0: i32, %arg1: i32) -> (i32, i32, i32) {
    %c0_i32 = arith.constant 0 : i32
    %c0_i32_0 = arith.constant 0 : i32
    %c0_i32_1 = arith.constant 0 : i32
    %c0_i32_2 = arith.constant 0 : i32
    return %c0_i32, %c0_i32_0, %c0_i32_1 : i32, i32, i32
  }
  func.func @transform_2(%arg0: i32, %arg1: i32) -> (i32, i32) {
    %c0_i32 = arith.constant 0 : i32
    %c0_i32_0 = arith.constant 0 : i32
    %c0_i32_1 = arith.constant 0 : i32
    return %c0_i32, %c0_i32_0 : i32, i32
  }
  func.func @transform_3(%arg0: i32, %arg1: i32) -> (i32, i32, i32, i32) {
    %c0_i32 = arith.constant 0 : i32
    %c0_i32_0 = arith.constant 0 : i32
    %c0_i32_1 = arith.constant 0 : i32
    return %arg0, %arg1, %c0_i32, %c0_i32_0 : i32, i32, i32, i32
  }
}

</mosaic_0001>

<llo_original>
// kernel: tpu_custom_call.1
$region0: #{tpu_custom_call.1}
  #allocation0 [shape = 'u32[]', space=smem, size = 0x4, offset = 0x4, fixed_abs, tag = 'smem constant byte address 0x4 - core index']
  #allocation1 [shape = 'u32[144,128]{1,0:T(1,128)}', space=vmem, size = 0x12000, scoped, tag = 'internal scratch']
  #allocation2 [shape = 'f32[96,128]{1,0:T(8,128)}', space=vmem, size = 0xc000, scoped, tag = 'scratch operand']
  %s0 = inlined_call_operand.vmem [shape: bf16[6,8,18,4], index: 0, kind: input, shape index: {}]
  %s1 = inlined_call_operand.vmem [shape: bf16[9,4,128], index: 1, kind: input, shape index: {}]
  %s2 = inlined_call_operand.vmem [shape: f32[1,128], index: 2, kind: input, shape index: {}]
  %s3 = inlined_call_operand.hbm [shape: f32[2,18,16,128], index: 3, kind: output, shape index: {}]
  %s4 = sld [smem:[#allocation0]]
  $region45: #{tpu_custom_call.1} parent=0
    _
  %s6 = ssub.s32 1, %s4
  %s7 = scalar_select 0, %s6, %s4
  $region1: #{tpu_custom_call.1} parent=0
    #allocation3 [shape = 'u8[98304]{0}', space=vmem, size = 0x18000, scoped, tag = 'output window, operand 0']
    #allocation4 [shape = 's32[2]{0}', space=sflag, size = 0x8, scoped, tag = 'scoped memory for tpu_custom_call.1']
    %8 = vsyncpa [#allocation4], 0
    %s9 = scalar_lea.sflag [#allocation4], 1
    %10 = vsyncpa %s9, 0
    loop: start=0, step=1, limit=8
    $region2: #{tpu_custom_call.1} parent=1 // loop_pre_header
      _
    $region3: #{tpu_custom_call.1} parent=1 // loop_header
      %s12 = sphi 0, %s16
      %p13 = scmp.ge.s32.totalorder %s12, 8
      %s19 = sphi 0, %s31
      %s20 = sphi 0, %s27
      %s21 = sphi 0, %s19
      %s22 = sphi 0, %s20
      %s23 = sphi 0, %s21
      %s24 = sphi 0, %s22
      %s38 = sphi 0, %s40
      %s41 = sphi 0, %s38
      %s42 = sphi 0, %s41
      %s58 = sphi 0, %s42
      %s62 = sphi 0, %s62
      %s64 = sphi 0, %s62
      %s65 = sphi 0, %s64
      %s79 = sphi 0, %s65
      %s83 = sphi 0, %s83
      %s85 = sphi 0, %s83
      %s86 = sphi 0, %s85
      %s100 = sphi 0, %s86
      %s108 = sphi 0, %s110
      %s111 = sphi 0, %s108
      %s112 = sphi 0, %s111
      %s128 = sphi 0, %s112
    $region4: #{tpu_custom_call.1} parent=1 // loop_header_branch
      %15 = sbr.rel (%p13) target = $region8
    $region5: #{tpu_custom_call.1} parent=1 // loop_body
      %s17 = ssub.s32 %s12, 1
      %s18 = ssub.s32 %s12, 2
      %s25 = sadd.s32 1, %s20
      %p26 = scmp.ge.s32.totalorder %s25, 3
      %s27 = scalar_select %p26, 0, %s25
      %s28 = sadd.s32 1, %s19
      %s29 = scalar_select %p26, %s28, %s19
      %p30 = scmp.ge.s32.totalorder %s29, 2
      %s31 = scalar_select %p30, 0, %s29
      %s32 = smul.u32 %s19, 3
      %s33 = sadd.s32 %s32, %s20
      %s34 = smul.u32 %s31, 3
      %s35 = sadd.s32 %s34, %s27
      %s36 = ssub.s32 %s33, %s35
      %p37 = scmp.eq.s32.totalorder %s36, 0
      %s39 = sadd.s32 %s38, 1
      %s40 = scalar_select %p37, %s38, %s39
      %p43 = pneg %p37
      %p44 = scmp.eq.s32.totalorder %s12, 5
      %p45 = por %p43, %p44
      %p46 = scmp.ne.s32.totalorder %s38, %s41
      %p47 = scmp.eq.s32.totalorder %s12, 0
      %p48 = por %p46, %p47
      %p49 = scmp.ne.s32.totalorder %s38, %s41
      %p50 = scmp.eq.s32.totalorder %s17, 5
      %p51 = por %p49, %p50
      %p52 = scmp.ne.s32.totalorder %s41, %s42
      %p53 = scmp.eq.s32.totalorder %s17, 0
      %p54 = por %p52, %p53
      %p55 = scmp.ne.s32.totalorder %s41, %s42
      %p56 = scmp.eq.s32.totalorder %s18, 5
      %p57 = por %p55, %p56
      %p59 = scmp.ne.s32.totalorder %s42, %s58
      %p60 = scmp.eq.s32.totalorder %s18, 0
      %p61 = por %p59, %p60
      %s63 = sadd.s32 %s62, 1
      %p66 = scmp.eq.s32.totalorder %s12, 5
      %p67 = scmp.ne.s32.totalorder %s62, %s64
      %p68 = scmp.eq.s32.totalorder %s12, 0
      %p69 = por %p67, %p68
      %p70 = scmp.ne.s32.totalorder %s62, %s64
      %p71 = scmp.eq.s32.totalorder %s17, 5
      %p72 = por %p70, %p71
      %p73 = scmp.ne.s32.totalorder %s64, %s65
      %p74 = scmp.eq.s32.totalorder %s17, 0
      %p75 = por %p73, %p74
      %p76 = scmp.ne.s32.totalorder %s64, %s65
      %p77 = scmp.eq.s32.totalorder %s18, 5
      %p78 = por %p76, %p77
      %p80 = scmp.ne.s32.totalorder %s65, %s79
      %p81 = scmp.eq.s32.totalorder %s18, 0
      %p82 = por %p80, %p81
      %s84 = sadd.s32 %s83, 1
      %p87 = scmp.eq.s32.totalorder %s12, 5
      %p88 = scmp.ne.s32.totalorder %s83, %s85
      %p89 = scmp.eq.s32.totalorder %s12, 0
      %p90 = por %p88, %p89
      %p91 = scmp.ne.s32.totalorder %s83, %s85
      %p92 = scmp.eq.s32.totalorder %s17, 5
      %p93 = por %p91, %p92
      %p94 = scmp.ne.s32.totalorder %s85, %s86
      %p95 = scmp.eq.s32.totalorder %s17, 0
      %p96 = por %p94, %p95
      %p97 = scmp.ne.s32.totalorder %s85, %s86
      %p98 = scmp.eq.s32.totalorder %s18, 5
      %p99 = por %p97, %p98
      %p101 = scmp.ne.s32.totalorder %s86, %s100
      %p102 = scmp.eq.s32.totalorder %s18, 0
      %p103 = por %p101, %p102
      %s104 = ssub.s32 %s19, %s31
      %s105 = ssub.s32 %s20, %s27
      %s106 = sor.u32 %s104, %s105
      %p107 = scmp.eq.s32.totalorder %s106, 0
      %s109 = sadd.s32 %s108, 1
      %s110 = scalar_select %p107, %s108, %s109
      %p113 = pneg %p107
      %p114 = scmp.eq.s32.totalorder %s12, 5
      %p115 = por %p113, %p114
      %p116 = scmp.ne.s32.totalorder %s108, %s111
      %p117 = scmp.eq.s32.totalorder %s12, 0
      %p118 = por %p116, %p117
      %p119 = scmp.ne.s32.totalorder %s108, %s111
      %p120 = scmp.eq.s32.totalorder %s17, 5
      %p121 = por %p119, %p120
      %p122 = scmp.ne.s32.totalorder %s111, %s112
      %p123 = scmp.eq.s32.totalorder %s17, 0
      %p124 = por %p122, %p123
      %p125 = scmp.ne.s32.totalorder %s111, %s112
      %p126 = scmp.eq.s32.totalorder %s18, 5
      %p127 = por %p125, %p126
      %p129 = scmp.ne.s32.totalorder %s112, %s128
      %p130 = scmp.eq.s32.totalorder %s18, 0
      %p131 = por %p129, %p130
      %p132 = scmp.le.s32.totalorder 1, %s12
      %p133 = scmp.lt.s32.totalorder %s12, 7
      %p134 = pnand %p132, %p133
      %p135 = pneg %p134
      // Predicated region
      $region9: #{tpu_custom_call.1} parent=5 // pred_check
        _
      $region10: #{tpu_custom_call.1} parent=5 // pred_check_branch
        %137 = sbr.rel (%p134) target = $region12
      $region11: #{tpu_custom_call.1} parent=5 // pred_region
        %s138 = ssub.s32 %s12, 1
        // Predicated region
        $region13: #{tpu_custom_call.1} parent=11 // pred_check
          %p139 = pneg %p75
        $region14: #{tpu_custom_call.1} parent=11 // pred_check_branch
          %141 = sbr.rel (%p139) target = $region16
        $region15: #{tpu_custom_call.1} parent=11 // pred_region
          _
        $region16: #{tpu_custom_call.1} parent=11 // pred_fallthru
          _
        // Predicated region
        $region17: #{tpu_custom_call.1} parent=11 // pred_check
          %p142 = pneg %p96
        $region18: #{tpu_custom_call.1} parent=11 // pred_check_branch
          %144 = sbr.rel (%p142) target = $region20
        $region19: #{tpu_custom_call.1} parent=11 // pred_region
          _
        $region20: #{tpu_custom_call.1} parent=11 // pred_fallthru
          _
      $region12: #{tpu_custom_call.1} parent=5 // pred_fallthru
        _
      %p145 = scmp.lt.s32.totalorder %s12, 6
      // Predicated region
      $region21: #{tpu_custom_call.1} parent=5 // pred_check
        %p146 = pneg %p145
      $region22: #{tpu_custom_call.1} parent=5 // pred_check_branch
        %148 = sbr.rel (%p146) target = $region24
      $region23: #{tpu_custom_call.1} parent=5 // pred_region
        // Predicated region
        $region25: #{tpu_custom_call.1} parent=23 // pred_check
          %p149 = pneg %p48
        $region26: #{tpu_custom_call.1} parent=23 // pred_check_branch
          %151 = sbr.rel (%p149) target = $region28
        $region27: #{tpu_custom_call.1} parent=23 // pred_region
          %s152 = smul.u32 %s19, 3
          %s153 = sadd.s32 %s152, %s20
          %p154 = scmp.lt.s32.totalorder %s153, 5
          %s155 = scalar_select %p154, %s153, 5
          %s156 = smul.addr %s155, 24
          %s157 = smul.addr %s156, 4
          %s158 = scalar_lea.vmem %s0, %s157
          %s159 = smul.u32 %s19, 3
          %s160 = sadd.s32 %s159, %s20
        $region28: #{tpu_custom_call.1} parent=23 // pred_fallthru
          _
      $region24: #{tpu_custom_call.1} parent=5 // pred_fallthru
        _
      %p161 = scmp.le.s32.totalorder 1, %s12
      %p162 = scmp.lt.s32.totalorder %s12, 7
      %p163 = pnand %p161, %p162
      %p164 = pneg %p163
      // Predicated region
      $region29: #{tpu_custom_call.1} parent=5 // pred_check
        _
      $region30: #{tpu_custom_call.1} parent=5 // pred_check_branch
        %166 = sbr.rel (%p163) target = $region32
      $region31: #{tpu_custom_call.1} parent=5 // pred_region
        %s167 = ssub.s32 %s12, 1
        %s168 = smul.u32 %s21, 3
        %s169 = sadd.s32 %s168, %s22
        %p170 = scmp.lt.s32.totalorder %s169, 5
        %s171 = scalar_select %p170, %s169, 5
        %s172 = smul.addr %s171, 24
        %s173 = smul.addr %s172, 4
        %s174 = scalar_lea.vmem %s0, %s173
        %p175 = pneg %p54
        %p176 = pneg %p51
        %p177 = pneg %p75
        %p178 = pneg %p72
        %p179 = pneg %p96
        %p180 = pneg %p93
        %p181 = pneg %p124
        %p182 = pneg %p121
        %s183 = sand.u32 %s111, 1
        %s184 = scalar_lea.sflag [#allocation4], %s183
        %s185 = sand.u32 %s111, 1
        %s186 = smul.addr %s185, 96
        %s187 = scalar_lea.vmem [#allocation3], %s186
        %s188 = smul.u32 %s21, 3
        %s189 = sadd.s32 %s188, %s22
        %p190 = scmp.lt.s32.totalorder %s189, 5
        %s191 = scalar_select %p190, %s189, 5
        %s192 = smul.addr %s191, 24
        %s193 = smul.addr %s192, 4
        %s194 = scalar_lea.vmem %s0, %s193
        %s195 = smul.u32 %s21, 3
        %s196 = sadd.s32 %s195, %s22
        %s197 = smul.u32 6, %s22
        %v199 = vld [vmem:[%s194] sm:$0xf]
        %v200 = vld [vmem:[%s194 + $0x4] sm:$0xf]
        %v201 = vld [vmem:[%s194 + $0x8] sm:$0x1]
        %v202 = vld [vmem:[%s194 + $0xc] sm:$0xf]
        %v203 = vld [vmem:[%s194 + $0x10] sm:$0xf]
        %v204 = vld [vmem:[%s194 + $0x14] sm:$0x1]
        %v205 = vld [vmem:[%s194 + $0x18] sm:$0xf]
        %v206 = vld [vmem:[%s194 + $0x1c] sm:$0xf]
        %v207 = vld [vmem:[%s194 + $0x20] sm:$0x1]
        %v208 = vld [vmem:[%s194 + $0x24] sm:$0xf]
        %v209 = vld [vmem:[%s194 + $0x28] sm:$0xf]
        %v210 = vld [vmem:[%s194 + $0x2c] sm:$0x1]
        %v211 = vld [vmem:[%s194 + $0x30] sm:$0xf]
        %v212 = vld [vmem:[%s194 + $0x34] sm:$0xf]
        %v213 = vld [vmem:[%s194 + $0x38] sm:$0x1]
        %v214 = vld [vmem:[%s194 + $0x3c] sm:$0xf]
        %v215 = vld [vmem:[%s194 + $0x40] sm:$0xf]
        %v216 = vld [vmem:[%s194 + $0x44] sm:$0x1]
        %vm217 = vsmask.f32 3328
        %vm218 = vsmask.f32 7440
        %vm219 = vmor %vm217, %vm218
        %v221 = vshrl.u32 %v199, 16
        %v223 = vrot.slane %v221, 4
        %v224 = vshll.u32 %v199, 16
        %v226 = vrot.slane %v224, 5
        %v227 = vor.u32 %v223, %v226
        %v228 = vrot.slane %v227, 4
        %v230 = vshll.u32 %v200, 16
        %v232 = vrot.slane %v230, 5
        %v233 = vsel %vm219, %v228, %v232
        %v234 = vshrl.u32 %v200, 16
        %v236 = vrot.slane %v234, 4
        %v237 = vor.u32 %v236, %v232
        %v238 = vrot.slane %v237, 4
        %v240 = vshll.u32 %v201, 16
        %v242 = vrot.slane %v240, 5
        %v243 = vsel %vm219, %v238, %v242
        %v245 = vshrl.u32 %v202, 16
        %v247 = vrot.slane %v245, 4
        %v248 = vshll.u32 %v202, 16
        %v250 = vrot.slane %v248, 5
        %v251 = vor.u32 %v247, %v250
        %v252 = vrot.slane %v251, 4
        %v254 = vshll.u32 %v203, 16
        %v256 = vrot.slane %v254, 5
        %v257 = vsel %vm219, %v252, %v256
        %v258 = vshrl.u32 %v203, 16
        %v260 = vrot.slane %v258, 4
        %v261 = vor.u32 %v260, %v256
        %v262 = vrot.slane %v261, 4
        %v264 = vshll.u32 %v204, 16
        %v266 = vrot.slane %v264, 5
        %v267 = vsel %vm219, %v262, %v266
        %v269 = vshrl.u32 %v205, 16
        %v271 = vrot.slane %v269, 4
        %v272 = vshll.u32 %v205, 16
        %v274 = vrot.slane %v272, 5
        %v275 = vor.u32 %v271, %v274
        %v276 = vrot.slane %v275, 4
        %v278 = vshll.u32 %v206, 16
        %v280 = vrot.slane %v278, 5
        %v281 = vsel %vm219, %v276, %v280
        %v282 = vshrl.u32 %v206, 16
        %v284 = vrot.slane %v282, 4
        %v285 = vor.u32 %v284, %v280
        %v286 = vrot.slane %v285, 4
        %v288 = vshll.u32 %v207, 16
        %v290 = vrot.slane %v288, 5
        %v291 = vsel %vm219, %v286, %v290
        %v293 = vshrl.u32 %v208, 16
        %v295 = vrot.slane %v293, 4
        %v296 = vshll.u32 %v208, 16
        %v298 = vrot.slane %v296, 5
        %v299 = vor.u32 %v295, %v298
        %v300 = vrot.slane %v299, 4
        %v302 = vshll.u32 %v209, 16
        %v304 = vrot.slane %v302, 5
        %v305 = vsel %vm219, %v300, %v304
        %v306 = vshrl.u32 %v209, 16
        %v308 = vrot.slane %v306, 4
        %v309 = vor.u32 %v308, %v304
        %v310 = vrot.slane %v309, 4
        %v312 = vshll.u32 %v210, 16
        %v314 = vrot.slane %v312, 5
        %v315 = vsel %vm219, %v310, %v314
        %v317 = vshrl.u32 %v211, 16
        %v319 = vrot.slane %v317, 4
        %v320 = vshll.u32 %v211, 16
        %v322 = vrot.slane %v320, 5
        %v323 = vor.u32 %v319, %v322
        %v324 = vrot.slane %v323, 4
        %v326 = vshll.u32 %v212, 16
        %v328 = vrot.slane %v326, 5
        %v329 = vsel %vm219, %v324, %v328
        %v330 = vshrl.u32 %v212, 16
        %v332 = vrot.slane %v330, 4
        %v333 = vor.u32 %v332, %v328
        %v334 = vrot.slane %v333, 4
        %v336 = vshll.u32 %v213, 16
        %v338 = vrot.slane %v336, 5
        %v339 = vsel %vm219, %v334, %v338
        %v341 = vshrl.u32 %v214, 16
        %v343 = vrot.slane %v341, 4
        %v344 = vshll.u32 %v214, 16
        %v346 = vrot.slane %v344, 5
        %v347 = vor.u32 %v343, %v346
        %v348 = vrot.slane %v347, 4
        %v350 = vshll.u32 %v215, 16
        %v352 = vrot.slane %v350, 5
        %v353 = vsel %vm219, %v348, %v352
        %v354 = vshrl.u32 %v215, 16
        %v356 = vrot.slane %v354, 4
        %v357 = vor.u32 %v356, %v352
        %v358 = vrot.slane %v357, 4
        %v360 = vshll.u32 %v216, 16
        %v362 = vrot.slane %v360, 5
        %v363 = vsel %vm219, %v358, %v362
        %vm382 = vcmask 1042432
        %vm383 = vcmask 1046532
        %vm384 = vmor %vm382, %vm383
        %v385 = vrot.slane %v199, 5
        %v386 = vrot.slane %v385, 4
        %v387 = vrot.slane %v200, 5
        %v388 = vsel %vm384, %v386, %v387
        %v389 = vrot.slane %v387, 4
        %v390 = vrot.slane %v201, 5
        %v391 = vsel %vm384, %v389, %v390
        %v392 = vrot.slane %v202, 5
        %v393 = vrot.slane %v392, 4
        %v394 = vrot.slane %v203, 5
        %v395 = vsel %vm384, %v393, %v394
        %v396 = vrot.slane %v394, 4
        %v397 = vrot.slane %v204, 5
        %v398 = vsel %vm384, %v396, %v397
        %v399 = vrot.slane %v205, 5
        %v400 = vrot.slane %v399, 4
        %v401 = vrot.slane %v206, 5
        %v402 = vsel %vm384, %v400, %v401
        %v403 = vrot.slane %v401, 4
        %v404 = vrot.slane %v207, 5
        %v405 = vsel %vm384, %v403, %v404
        %v406 = vrot.slane %v208, 5
        %v407 = vrot.slane %v406, 4
        %v408 = vrot.slane %v209, 5
        %v409 = vsel %vm384, %v407, %v408
        %v410 = vrot.slane %v408, 4
        %v411 = vrot.slane %v210, 5
        %v412 = vsel %vm384, %v410, %v411
        %v413 = vrot.slane %v211, 5
        %v414 = vrot.slane %v413, 4
        %v415 = vrot.slane %v212, 5
        %v416 = vsel %vm384, %v414, %v415
        %v417 = vrot.slane %v415, 4
        %v418 = vrot.slane %v213, 5
        %v419 = vsel %vm384, %v417, %v418
        %v420 = vrot.slane %v214, 5
        %v421 = vrot.slane %v420, 4
        %v422 = vrot.slane %v215, 5
        %v423 = vsel %vm384, %v421, %v422
        %v424 = vrot.slane %v422, 4
        %v425 = vrot.slane %v216, 5
        %v426 = vsel %vm384, %v424, %v425
        %s427 = scalar_lea.vmem %s194, 12
        %v428 = vld [vmem:[%s427] sm:$0xf]
        %v429 = vld [vmem:[%s427 + $0x4] sm:$0xf]
        %v430 = vld [vmem:[%s427 + $0x8] sm:$0x1]
        %v431 = vld [vmem:[%s427 + $0xc] sm:$0xf]
        %v432 = vld [vmem:[%s427 + $0x10] sm:$0xf]
        %v433 = vld [vmem:[%s427 + $0x14] sm:$0x1]
        %v434 = vld [vmem:[%s427 + $0x18] sm:$0xf]
        %v435 = vld [vmem:[%s427 + $0x1c] sm:$0xf]
        %v436 = vld [vmem:[%s427 + $0x20] sm:$0x1]
        %v437 = vld [vmem:[%s427 + $0x24] sm:$0xf]
        %v438 = vld [vmem:[%s427 + $0x28] sm:$0xf]
        %v439 = vld [vmem:[%s427 + $0x2c] sm:$0x1]
        %v440 = vld [vmem:[%s427 + $0x30] sm:$0xf]
        %v441 = vld [vmem:[%s427 + $0x34] sm:$0xf]
        %v442 = vld [vmem:[%s427 + $0x38] sm:$0x1]
        %v443 = vld [vmem:[%s427 + $0x3c] sm:$0xf]
        %v444 = vld [vmem:[%s427 + $0x40] sm:$0xf]
        %v445 = vld [vmem:[%s427 + $0x44] sm:$0x1]
        %v447 = vshrl.u32 %v428, 16
        %v449 = vrot.slane %v447, 4
        %v450 = vshll.u32 %v428, 16
        %v452 = vrot.slane %v450, 5
        %v453 = vor.u32 %v449, %v452
        %v454 = vrot.slane %v453, 4
        %v456 = vshll.u32 %v429, 16
        %v458 = vrot.slane %v456, 5
        %v459 = vsel %vm219, %v454, %v458
        %v460 = vshrl.u32 %v429, 16
        %v462 = vrot.slane %v460, 4
        %v463 = vor.u32 %v462, %v458
        %v464 = vrot.slane %v463, 4
        %v466 = vshll.u32 %v430, 16
        %v468 = vrot.slane %v466, 5
        %v469 = vsel %vm219, %v464, %v468
        %v471 = vshrl.u32 %v431, 16
        %v473 = vrot.slane %v471, 4
        %v474 = vshll.u32 %v431, 16
        %v476 = vrot.slane %v474, 5
        %v477 = vor.u32 %v473, %v476
        %v478 = vrot.slane %v477, 4
        %v480 = vshll.u32 %v432, 16
        %v482 = vrot.slane %v480, 5
        %v483 = vsel %vm219, %v478, %v482
        %v484 = vshrl.u32 %v432, 16
        %v486 = vrot.slane %v484, 4
        %v487 = vor.u32 %v486, %v482
        %v488 = vrot.slane %v487, 4
        %v490 = vshll.u32 %v433, 16
        %v492 = vrot.slane %v490, 5
        %v493 = vsel %vm219, %v488, %v492
        %v495 = vshrl.u32 %v434, 16
        %v497 = vrot.slane %v495, 4
        %v498 = vshll.u32 %v434, 16
        %v500 = vrot.slane %v498, 5
        %v501 = vor.u32 %v497, %v500
        %v502 = vrot.slane %v501, 4
        %v504 = vshll.u32 %v435, 16
        %v506 = vrot.slane %v504, 5
        %v507 = vsel %vm219, %v502, %v506
        %v508 = vshrl.u32 %v435, 16
        %v510 = vrot.slane %v508, 4
        %v511 = vor.u32 %v510, %v506
        %v512 = vrot.slane %v511, 4
        %v514 = vshll.u32 %v436, 16
        %v516 = vrot.slane %v514, 5
        %v517 = vsel %vm219, %v512, %v516
        %v519 = vshrl.u32 %v437, 16
        %v521 = vrot.slane %v519, 4
        %v522 = vshll.u32 %v437, 16
        %v524 = vrot.slane %v522, 5
        %v525 = vor.u32 %v521, %v524
        %v526 = vrot.slane %v525, 4
        %v528 = vshll.u32 %v438, 16
        %v530 = vrot.slane %v528, 5
        %v531 = vsel %vm219, %v526, %v530
        %v532 = vshrl.u32 %v438, 16
        %v534 = vrot.slane %v532, 4
        %v535 = vor.u32 %v534, %v530
        %v536 = vrot.slane %v535, 4
        %v538 = vshll.u32 %v439, 16
        %v540 = vrot.slane %v538, 5
        %v541 = vsel %vm219, %v536, %v540
        %v543 = vshrl.u32 %v440, 16
        %v545 = vrot.slane %v543, 4
        %v546 = vshll.u32 %v440, 16
        %v548 = vrot.slane %v546, 5
        %v549 = vor.u32 %v545, %v548
        %v550 = vrot.slane %v549, 4
        %v552 = vshll.u32 %v441, 16
        %v554 = vrot.slane %v552, 5
        %v555 = vsel %vm219, %v550, %v554
        %v556 = vshrl.u32 %v441, 16
        %v558 = vrot.slane %v556, 4
        %v559 = vor.u32 %v558, %v554
        %v560 = vrot.slane %v559, 4
        %v562 = vshll.u32 %v442, 16
        %v564 = vrot.slane %v562, 5
        %v565 = vsel %vm219, %v560, %v564
        %v567 = vshrl.u32 %v443, 16
        %v569 = vrot.slane %v567, 4
        %v570 = vshll.u32 %v443, 16
        %v572 = vrot.slane %v570, 5
        %v573 = vor.u32 %v569, %v572
        %v574 = vrot.slane %v573, 4
        %v576 = vshll.u32 %v444, 16
        %v578 = vrot.slane %v576, 5
        %v579 = vsel %vm219, %v574, %v578
        %v580 = vshrl.u32 %v444, 16
        %v582 = vrot.slane %v580, 4
        %v583 = vor.u32 %v582, %v578
        %v584 = vrot.slane %v583, 4
        %v586 = vshll.u32 %v445, 16
        %v588 = vrot.slane %v586, 5
        %v589 = vsel %vm219, %v584, %v588
        %v608 = vrot.slane %v428, 5
        %v609 = vrot.slane %v608, 4
        %v610 = vrot.slane %v429, 5
        %v611 = vsel %vm384, %v609, %v610
        %v612 = vrot.slane %v610, 4
        %v613 = vrot.slane %v430, 5
        %v614 = vsel %vm384, %v612, %v613
        %v615 = vrot.slane %v431, 5
        %v616 = vrot.slane %v615, 4
        %v617 = vrot.slane %v432, 5
        %v618 = vsel %vm384, %v616, %v617
        %v619 = vrot.slane %v617, 4
        %v620 = vrot.slane %v433, 5
        %v621 = vsel %vm384, %v619, %v620
        %v622 = vrot.slane %v434, 5
        %v623 = vrot.slane %v622, 4
        %v624 = vrot.slane %v435, 5
        %v625 = vsel %vm384, %v623, %v624
        %v626 = vrot.slane %v624, 4
        %v627 = vrot.slane %v436, 5
        %v628 = vsel %vm384, %v626, %v627
        %v629 = vrot.slane %v437, 5
        %v630 = vrot.slane %v629, 4
        %v631 = vrot.slane %v438, 5
        %v632 = vsel %vm384, %v630, %v631
        %v633 = vrot.slane %v631, 4
        %v634 = vrot.slane %v439, 5
        %v635 = vsel %vm384, %v633, %v634
        %v636 = vrot.slane %v440, 5
        %v637 = vrot.slane %v636, 4
        %v638 = vrot.slane %v441, 5
        %v639 = vsel %vm384, %v637, %v638
        %v640 = vrot.slane %v638, 4
        %v641 = vrot.slane %v442, 5
        %v642 = vsel %vm384, %v640, %v641
        %v643 = vrot.slane %v443, 5
        %v644 = vrot.slane %v643, 4
        %v645 = vrot.slane %v444, 5
        %v646 = vsel %vm384, %v644, %v645
        %v647 = vrot.slane %v645, 4
        %v648 = vrot.slane %v445, 5
        %v649 = vsel %vm384, %v647, %v648
        %s650 = scalar_lea.vmem %s194, 24
        %v651 = vld [vmem:[%s650] sm:$0xf]
        %v652 = vld [vmem:[%s650 + $0x4] sm:$0xf]
        %v653 = vld [vmem:[%s650 + $0x8] sm:$0x1]
        %v654 = vld [vmem:[%s650 + $0xc] sm:$0xf]
        %v655 = vld [vmem:[%s650 + $0x10] sm:$0xf]
        %v656 = vld [vmem:[%s650 + $0x14] sm:$0x1]
        %v657 = vld [vmem:[%s650 + $0x18] sm:$0xf]
        %v658 = vld [vmem:[%s650 + $0x1c] sm:$0xf]
        %v659 = vld [vmem:[%s650 + $0x20] sm:$0x1]
        %v660 = vld [vmem:[%s650 + $0x24] sm:$0xf]
        %v661 = vld [vmem:[%s650 + $0x28] sm:$0xf]
        %v662 = vld [vmem:[%s650 + $0x2c] sm:$0x1]
        %v663 = vld [vmem:[%s650 + $0x30] sm:$0xf]
        %v664 = vld [vmem:[%s650 + $0x34] sm:$0xf]
        %v665 = vld [vmem:[%s650 + $0x38] sm:$0x1]
        %v666 = vld [vmem:[%s650 + $0x3c] sm:$0xf]
        %v667 = vld [vmem:[%s650 + $0x40] sm:$0xf]
        %v668 = vld [vmem:[%s650 + $0x44] sm:$0x1]
        %v670 = vshrl.u32 %v651, 16
        %v672 = vrot.slane %v670, 4
        %v673 = vshll.u32 %v651, 16
        %v675 = vrot.slane %v673, 5
        %v676 = vor.u32 %v672, %v675
        %v677 = vrot.slane %v676, 4
        %v679 = vshll.u32 %v652, 16
        %v681 = vrot.slane %v679, 5
        %v682 = vsel %vm219, %v677, %v681
        %v683 = vshrl.u32 %v652, 16
        %v685 = vrot.slane %v683, 4
        %v686 = vor.u32 %v685, %v681
        %v687 = vrot.slane %v686, 4
        %v689 = vshll.u32 %v653, 16
        %v691 = vrot.slane %v689, 5
        %v692 = vsel %vm219, %v687, %v691
        %v694 = vshrl.u32 %v654, 16
        %v696 = vrot.slane %v694, 4
        %v697 = vshll.u32 %v654, 16
        %v699 = vrot.slane %v697, 5
        %v700 = vor.u32 %v696, %v699
        %v701 = vrot.slane %v700, 4
        %v703 = vshll.u32 %v655, 16
        %v705 = vrot.slane %v703, 5
        %v706 = vsel %vm219, %v701, %v705
        %v707 = vshrl.u32 %v655, 16
        %v709 = vrot.slane %v707, 4
        %v710 = vor.u32 %v709, %v705
        %v711 = vrot.slane %v710, 4
        %v713 = vshll.u32 %v656, 16
        %v715 = vrot.slane %v713, 5
        %v716 = vsel %vm219, %v711, %v715
        %v718 = vshrl.u32 %v657, 16
        %v720 = vrot.slane %v718, 4
        %v721 = vshll.u32 %v657, 16
        %v723 = vrot.slane %v721, 5
        %v724 = vor.u32 %v720, %v723
        %v725 = vrot.slane %v724, 4
        %v727 = vshll.u32 %v658, 16
        %v729 = vrot.slane %v727, 5
        %v730 = vsel %vm219, %v725, %v729
        %v731 = vshrl.u32 %v658, 16
        %v733 = vrot.slane %v731, 4
        %v734 = vor.u32 %v733, %v729
        %v735 = vrot.slane %v734, 4
        %v737 = vshll.u32 %v659, 16
        %v739 = vrot.slane %v737, 5
        %v740 = vsel %vm219, %v735, %v739
        %v742 = vshrl.u32 %v660, 16
        %v744 = vrot.slane %v742, 4
        %v745 = vshll.u32 %v660, 16
        %v747 = vrot.slane %v745, 5
        %v748 = vor.u32 %v744, %v747
        %v749 = vrot.slane %v748, 4
        %v751 = vshll.u32 %v661, 16
        %v753 = vrot.slane %v751, 5
        %v754 = vsel %vm219, %v749, %v753
        %v755 = vshrl.u32 %v661, 16
        %v757 = vrot.slane %v755, 4
        %v758 = vor.u32 %v757, %v753
        %v759 = vrot.slane %v758, 4
        %v761 = vshll.u32 %v662, 16
        %v763 = vrot.slane %v761, 5
        %v764 = vsel %vm219, %v759, %v763
        %v766 = vshrl.u32 %v663, 16
        %v768 = vrot.slane %v766, 4
        %v769 = vshll.u32 %v663, 16
        %v771 = vrot.slane %v769, 5
        %v772 = vor.u32 %v768, %v771
        %v773 = vrot.slane %v772, 4
        %v775 = vshll.u32 %v664, 16
        %v777 = vrot.slane %v775, 5
        %v778 = vsel %vm219, %v773, %v777
        %v779 = vshrl.u32 %v664, 16
        %v781 = vrot.slane %v779, 4
        %v782 = vor.u32 %v781, %v777
        %v783 = vrot.slane %v782, 4
        %v785 = vshll.u32 %v665, 16
        %v787 = vrot.slane %v785, 5
        %v788 = vsel %vm219, %v783, %v787
        %v790 = vshrl.u32 %v666, 16
        %v792 = vrot.slane %v790, 4
        %v793 = vshll.u32 %v666, 16
        %v795 = vrot.slane %v793, 5
        %v796 = vor.u32 %v792, %v795
        %v797 = vrot.slane %v796, 4
        %v799 = vshll.u32 %v667, 16
        %v801 = vrot.slane %v799, 5
        %v802 = vsel %vm219, %v797, %v801
        %v803 = vshrl.u32 %v667, 16
        %v805 = vrot.slane %v803, 4
        %v806 = vor.u32 %v805, %v801
        %v807 = vrot.slane %v806, 4
        %v809 = vshll.u32 %v668, 16
        %v811 = vrot.slane %v809, 5
        %v812 = vsel %vm219, %v807, %v811
        %v831 = vrot.slane %v651, 5
        %v832 = vrot.slane %v831, 4
        %v833 = vrot.slane %v652, 5
        %v834 = vsel %vm384, %v832, %v833
        %v835 = vrot.slane %v833, 4
        %v836 = vrot.slane %v653, 5
        %v837 = vsel %vm384, %v835, %v836
        %v838 = vrot.slane %v654, 5
        %v839 = vrot.slane %v838, 4
        %v840 = vrot.slane %v655, 5
        %v841 = vsel %vm384, %v839, %v840
        %v842 = vrot.slane %v840, 4
        %v843 = vrot.slane %v656, 5
        %v844 = vsel %vm384, %v842, %v843
        %v845 = vrot.slane %v657, 5
        %v846 = vrot.slane %v845, 4
        %v847 = vrot.slane %v658, 5
        %v848 = vsel %vm384, %v846, %v847
        %v849 = vrot.slane %v847, 4
        %v850 = vrot.slane %v659, 5
        %v851 = vsel %vm384, %v849, %v850
        %v852 = vrot.slane %v660, 5
        %v853 = vrot.slane %v852, 4
        %v854 = vrot.slane %v661, 5
        %v855 = vsel %vm384, %v853, %v854
        %v856 = vrot.slane %v854, 4
        %v857 = vrot.slane %v662, 5
        %v858 = vsel %vm384, %v856, %v857
        %v859 = vrot.slane %v663, 5
        %v860 = vrot.slane %v859, 4
        %v861 = vrot.slane %v664, 5
        %v862 = vsel %vm384, %v860, %v861
        %v863 = vrot.slane %v861, 4
        %v864 = vrot.slane %v665, 5
        %v865 = vsel %vm384, %v863, %v864
        %v866 = vrot.slane %v666, 5
        %v867 = vrot.slane %v866, 4
        %v868 = vrot.slane %v667, 5
        %v869 = vsel %vm384, %v867, %v868
        %v870 = vrot.slane %v868, 4
        %v871 = vrot.slane %v668, 5
        %v872 = vsel %vm384, %v870, %v871
        %v873 = vld [vmem:[%s1] sm:$0x3]
        %v874 = vunpack.c.l.b16 %v199
        %v875 = vunpack.c.l.b16 %v200
        %v876 = vunpack.c.l.b16 %v202
        %v877 = vunpack.c.l.b16 %v203
        %v878 = vunpack.c.l.b16 %v205
        %v879 = vunpack.c.l.b16 %v206
        %v880 = vunpack.c.l.b16 %v208
        %v881 = vunpack.c.l.b16 %v209
        %v882 = vunpack.c.l.b16 %v211
        %v883 = vunpack.c.l.b16 %v212
        %v884 = vunpack.c.l.b16 %v214
        %v885 = vunpack.c.l.b16 %v215
        %v886 = vpack.c.b16 %v875, %v874
        %v887 = vpack.c.b16 %v877, %v876
        %v888 = vpack.c.b16 %v879, %v878
        %v889 = vpack.c.b16 %v881, %v880
        %v890 = vpack.c.b16 %v883, %v882
        %v891 = vpack.c.b16 %v885, %v884
        %vm892 = vcmask 31744
        %v894 = vsel %vm892, %v886, 0
        %v897 = vsel %vm892, %v887, 0
        %v900 = vsel %vm892, %v888, 0
        %v903 = vsel %vm892, %v889, 0
        %v906 = vsel %vm892, %v890, 0
        %v909 = vsel %vm892, %v891, 0
        %vm911 = vcmask 1041408
        %v913 = vsel %vm911, %v873, 0
        %915 = vmatprep.subr.bf16.mxu0 0
        %916 = vmatpush1.bf16.msra.mxu0 %v913
        %917 = vmatprep.subr.bf16.mxu0 0
        %918 = vmatpush1.bf16.msra.mxu0 0
        %919 = vmatprep.subr.bf16.mxu0 0
        %920 = vmatpush1.bf16.msra.mxu0 0
        %921 = vmatprep.subr.bf16.mxu0 0
        %922 = vmatpush1.bf16.msra.mxu0 0
        %923 = vmatprep.subr.bf16.mxu0 0
        %924 = vmatpush1.bf16.msra.mxu0 0
        %925 = vmatprep.subr.bf16.mxu0 0
        %926 = vmatpush1.bf16.msra.mxu0 0
        %927 = vmatprep.subr.bf16.mxu0 0
        %928 = vmatpush1.bf16.msra.mxu0 0
        %929 = vmatprep.subr.bf16.mxu0 0
        %930 = vmatpush1.bf16.msra.mxu0 0
        %931 = vmatprep.subr.bf16.mxu0 0
        %932 = vmatpush1.bf16.msra.mxu0 0
        %933 = vmatprep.subr.bf16.mxu0 0
        %934 = vmatpush1.bf16.msra.mxu0 0
        %935 = vmatprep.subr.bf16.mxu0 0
        %936 = vmatpush1.bf16.msra.mxu0 0
        %937 = vmatprep.subr.bf16.mxu0 0
        %938 = vmatpush1.bf16.msra.mxu0 0
        %939 = vmatprep.subr.bf16.mxu0 0
        %940 = vmatpush1.bf16.msra.mxu0 0
        %941 = vmatprep.subr.bf16.mxu0 0
        %942 = vmatpush1.bf16.msra.mxu0 0
        %943 = vmatprep.subr.bf16.mxu0 0
        %944 = vmatpush1.bf16.msra.mxu0 0
        %945 = vmatprep.subr.bf16.mxu0 0
        %946 = vmatpush1.bf16.msra.mxu0 0
        %947 = vmatprep.mubr.bf16.mxu0 0
        %948 = vmatmul.mubr.bf16.gmra.mrb[0].mxu0 %v894
        %v949 = vpop.f32.mrb[0].mxu0
        %v950 = vadd.f32 0.0, %v949
        %v951 = vpop.f32.mrb[0].mxu0
        %v952 = vpop.f32.mrb[0].mxu0
        %v953 = vadd.f32 0.0, %v952
        %v954 = vpop.f32.mrb[0].mxu0
        %955 = vmatprep.mubr.bf16.mxu0 0
        %956 = vmatmul.mubr.bf16.gmra.mrb[0].mxu0 %v897
        %v957 = vpop.f32.mrb[0].mxu0
        %v958 = vadd.f32 0.0, %v957
        %v959 = vpop.f32.mrb[0].mxu0
        %v960 = vpop.f32.mrb[0].mxu0
        %v961 = vadd.f32 0.0, %v960
        %v962 = vpop.f32.mrb[0].mxu0
        %963 = vmatprep.mubr.bf16.mxu0 0
        %964 = vmatmul.mubr.bf16.gmra.mrb[0].mxu0 %v900
        %v965 = vpop.f32.mrb[0].mxu0
        %v966 = vadd.f32 0.0, %v965
        %v967 = vpop.f32.mrb[0].mxu0
        %v968 = vpop.f32.mrb[0].mxu0
        %v969 = vadd.f32 0.0, %v968
        %v970 = vpop.f32.mrb[0].mxu0
        %971 = vmatprep.mubr.bf16.mxu0 0
        %972 = vmatmul.mubr.bf16.gmra.mrb[0].mxu0 %v903
        %v973 = vpop.f32.mrb[0].mxu0
        %v974 = vadd.f32 0.0, %v973
        %v975 = vpop.f32.mrb[0].mxu0
        %v976 = vpop.f32.mrb[0].mxu0
        %v977 = vadd.f32 0.0, %v976
        %v978 = vpop.f32.mrb[0].mxu0
        %979 = vmatprep.mubr.bf16.mxu0 0
        %980 = vmatmul.mubr.bf16.gmra.mrb[0].mxu0 %v906
        %v981 = vpop.f32.mrb[0].mxu0
        %v982 = vadd.f32 0.0, %v981
        %v983 = vpop.f32.mrb[0].mxu0
        %v984 = vpop.f32.mrb[0].mxu0
        %v985 = vadd.f32 0.0, %v984
        %v986 = vpop.f32.mrb[0].mxu0
        %987 = vmatprep.mubr.bf16.mxu0 0
        %988 = vmatmul.mubr.bf16.gmra.mrb[0].mxu0 %v909
        %v989 = vpop.f32.mrb[0].mxu0
        %v990 = vadd.f32 0.0, %v989
        %v991 = vpop.f32.mrb[0].mxu0
        %v992 = vpop.f32.mrb[0].mxu0
        %v993 = vadd.f32 0.0, %v992
        %v994 = vpop.f32.mrb[0].mxu0
        %995 = vdwg.mxu0
        %996 = vst [vmem:[#allocation2] sm:$0xff] %v950
        %997 = vst [vmem:[#allocation2 + $0x8] sm:$0xff] %v953
        %998 = vst [vmem:[#allocation2 + $0x10] sm:$0xff] %v958
        %999 = vst [vmem:[#allocation2 + $0x18] sm:$0xff] %v961
        %1000 = vst [vmem:[#allocation2 + $0x20] sm:$0xff] %v966
        %1001 = vst [vmem:[#allocation2 + $0x28] sm:$0xff] %v969
        %1002 = vst [vmem:[#allocation2 + $0x30] sm:$0xff] %v974
        %1003 = vst [vmem:[#allocation2 + $0x38] sm:$0xff] %v977
        %1004 = vst [vmem:[#allocation2 + $0x40] sm:$0xff] %v982
        %1005 = vst [vmem:[#allocation2 + $0x48] sm:$0xff] %v985
        %1006 = vst [vmem:[#allocation2 + $0x50] sm:$0xff] %v990
        %1007 = vst [vmem:[#allocation2 + $0x58] sm:$0xff] %v993
        %s1008 = scalar_lea.vmem %s1, 2
        %v1009 = vld [vmem:[%s1008] sm:$0x3]
        %v1010 = vunpack.c.l.b16 %v233
        %v1011 = vunpack.c.l.b16 %v243
        %v1012 = vunpack.c.l.b16 %v257
        %v1013 = vunpack.c.l.b16 %v267
        %v1014 = vunpack.c.l.b16 %v281
        %v1015 = vunpack.c.l.b16 %v291
        %v1016 = vunpack.c.l.b16 %v305
        %v1017 = vunpack.c.l.b16 %v315
        %v1018 = vunpack.c.l.b16 %v329
        %v1019 = vunpack.c.l.b16 %v339
        %v1020 = vunpack.c.l.b16 %v353
        %v1021 = vunpack.c.l.b16 %v363
        %v1022 = vpack.c.b16 %v1011, %v1010
        %v1023 = vpack.c.b16 %v1013, %v1012
        %v1024 = vpack.c.b16 %v1015, %v1014
        %v1025 = vpack.c.b16 %v1017, %v1016
        %v1026 = vpack.c.b16 %v1019, %v1018
        %v1027 = vpack.c.b16 %v1021, %v1020
        %v1029 = vsel %vm892, %v1022, 0
        %v1032 = vsel %vm892, %v1023, 0
        %v1035 = vsel %vm892, %v1024, 0
        %v1038 = vsel %vm892, %v1025, 0
        %v1041 = vsel %vm892, %v1026, 0
        %v1044 = vsel %vm892, %v1027, 0
        %v1047 = vsel %vm911, %v1009, 0
        %1049 = vmatprep.subr.bf16.mxu0 0
        %1050 = vmatpush1.bf16.msra.mxu0 %v1047
        %1051 = vmatprep.subr.bf16.mxu0 0
        %1052 = vmatpush1.bf16.msra.mxu0 0
        %1053 = vmatprep.subr.bf16.mxu0 0
        %1054 = vmatpush1.bf16.msra.mxu0 0
        %1055 = vmatprep.subr.bf16.mxu0 0
        %1056 = vmatpush1.bf16.msra.mxu0 0
        %1057 = vmatprep.subr.bf16.mxu0 0
        %1058 = vmatpush1.bf16.msra.mxu0 0
        %1059 = vmatprep.subr.bf16.mxu0 0
        %1060 = vmatpush1.bf16.msra.mxu0 0
        %1061 = vmatprep.subr.bf16.mxu0 0
        %1062 = vmatpush1.bf16.msra.mxu0 0
        %1063 = vmatprep.subr.bf16.mxu0 0
        %1064 = vmatpush1.bf16.msra.mxu0 0
        %1065 = vmatprep.subr.bf16.mxu0 0
        %1066 = vmatpush1.bf16.msra.mxu0 0
        %1067 = vmatprep.subr.bf16.mxu0 0
        %1068 = vmatpush1.bf16.msra.mxu0 0
        %1069 = vmatprep.subr.bf16.mxu0 0
        %1070 = vmatpush1.bf16.msra.mxu0 0
        %1071 = vmatprep.subr.bf16.mxu0 0
        %1072 = vmatpush1.bf16.msra.mxu0 0
        %1073 = vmatprep.subr.bf16.mxu0 0
        %1074 = vmatpush1.bf16.msra.mxu0 0
        %1075 = vmatprep.subr.bf16.mxu0 0
        %1076 = vmatpush1.bf16.msra.mxu0 0
        %1077 = vmatprep.subr.bf16.mxu0 0
        %1078 = vmatpush1.bf16.msra.mxu0 0
        %1079 = vmatprep.subr.bf16.mxu0 0
        %1080 = vmatpush1.bf16.msra.mxu0 0
        %1081 = vmatprep.mubr.bf16.mxu0 0
        %1082 = vmatmul.mubr.bf16.gmra.mrb[0].mxu0 %v1029
        %v1083 = vpop.f32.mrb[0].mxu0
        %v1084 = vadd.f32 0.0, %v1083
        %v1085 = vpop.f32.mrb[0].mxu0
        %v1086 = vpop.f32.mrb[0].mxu0
        %v1087 = vadd.f32 0.0, %v1086
        %v1088 = vpop.f32.mrb[0].mxu0
        %1089 = vmatprep.mubr.bf16.mxu0 0
        %1090 = vmatmul.mubr.bf16.gmra.mrb[0].mxu0 %v1032
        %v1091 = vpop.f32.mrb[0].mxu0
        %v1092 = vadd.f32 0.0, %v1091
        %v1093 = vpop.f32.mrb[0].mxu0
        %v1094 = vpop.f32.mrb[0].mxu0
        %v1095 = vadd.f32 0.0, %v1094
        %v1096 = vpop.f32.mrb[0].mxu0
        %1097 = vmatprep.mubr.bf16.mxu0 0
        %1098 = vmatmul.mubr.bf16.gmra.mrb[0].mxu0 %v1035
        %v1099 = vpop.f32.mrb[0].mxu0
        %v1100 = vadd.f32 0.0, %v1099
        %v1101 = vpop.f32.mrb[0].mxu0
        %v1102 = vpop.f32.mrb[0].mxu0
        %v1103 = vadd.f32 0.0, %v1102
        %v1104 = vpop.f32.mrb[0].mxu0
        %1105 = vmatprep.mubr.bf16.mxu0 0
        %1106 = vmatmul.mubr.bf16.gmra.mrb[0].mxu0 %v1038
        %v1107 = vpop.f32.mrb[0].mxu0
        %v1108 = vadd.f32 0.0, %v1107
        %v1109 = vpop.f32.mrb[0].mxu0
        %v1110 = vpop.f32.mrb[0].mxu0
        %v1111 = vadd.f32 0.0, %v1110
        %v1112 = vpop.f32.mrb[0].mxu0
        %1113 = vmatprep.mubr.bf16.mxu0 0
        %1114 = vmatmul.mubr.bf16.gmra.mrb[0].mxu0 %v1041
        %v1115 = vpop.f32.mrb[0].mxu0
        %v1116 = vadd.f32 0.0, %v1115
        %v1117 = vpop.f32.mrb[0].mxu0
        %v1118 = vpop.f32.mrb[0].mxu0
        %v1119 = vadd.f32 0.0, %v1118
        %v1120 = vpop.f32.mrb[0].mxu0
        %1121 = vmatprep.mubr.bf16.mxu0 0
        %1122 = vmatmul.mubr.bf16.gmra.mrb[0].mxu0 %v1044
        %v1123 = vpop.f32.mrb[0].mxu0
        %v1124 = vadd.f32 0.0, %v1123
        %v1125 = vpop.f32.mrb[0].mxu0
        %v1126 = vpop.f32.mrb[0].mxu0
        %v1127 = vadd.f32 0.0, %v1126
        %v1128 = vpop.f32.mrb[0].mxu0
        %1129 = vdwg.mxu0
        %v1130 = vld [vmem:[#allocation2] sm:$0xff]
        %v1131 = vld [vmem:[#allocation2 + $0x8] sm:$0xff]
        %v1132 = vld [vmem:[#allocation2 + $0x10] sm:$0xff]
        %v1133 = vld [vmem:[#allocation2 + $0x18] sm:$0xff]
        %v1134 = vld [vmem:[#allocation2 + $0x20] sm:$0xff]
        %v1135 = vld [vmem:[#allocation2 + $0x28] sm:$0xff]
        %v1136 = vld [vmem:[#allocation2 + $0x30] sm:$0xff]
        %v1137 = vld [vmem:[#allocation2 + $0x38] sm:$0xff]
        %v1138 = vld [vmem:[#allocation2 + $0x40] sm:$0xff]
        %v1139 = vld [vmem:[#allocation2 + $0x48] sm:$0xff]
        %v1140 = vld [vmem:[#allocation2 + $0x50] sm:$0xff]
        %v1141 = vld [vmem:[#allocation2 + $0x58] sm:$0xff]
        %v1142 = vadd.f32 %v1130, %v1084
        %v1143 = vadd.f32 %v1131, %v1087
        %v1144 = vadd.f32 %v1132, %v1092
        %v1145 = vadd.f32 %v1133, %v1095
        %v1146 = vadd.f32 %v1134, %v1100
        %v1147 = vadd.f32 %v1135, %v1103
        %v1148 = vadd.f32 %v1136, %v1108
        %v1149 = vadd.f32 %v1137, %v1111
        %v1150 = vadd.f32 %v1138, %v1116
        %v1151 = vadd.f32 %v1139, %v1119
        %v1152 = vadd.f32 %v1140, %v1124
        %v1153 = vadd.f32 %v1141, %v1127
        %1154 = vst [vmem:[#allocation2] sm:$0xff] %v1142
        %1155 = vst [vmem:[#allocation2 + $0x8] sm:$0xff] %v1143
        %1156 = vst [vmem:[#allocation2 + $0x10] sm:$0xff] %v1144
        %1157 = vst [vmem:[#allocation2 + $0x18] sm:$0xff] %v1145
        %1158 = vst [vmem:[#allocation2 + $0x20] sm:$0xff] %v1146
        %1159 = vst [vmem:[#allocation2 + $0x28] sm:$0xff] %v1147
        %1160 = vst [vmem:[#allocation2 + $0x30] sm:$0xff] %v1148
        %1161 = vst [vmem:[#allocation2 + $0x38] sm:$0xff] %v1149
        %1162 = vst [vmem:[#allocation2 + $0x40] sm:$0xff] %v1150
        %1163 = vst [vmem:[#allocation2 + $0x48] sm:$0xff] %v1151
        %1164 = vst [vmem:[#allocation2 + $0x50] sm:$0xff] %v1152
        %1165 = vst [vmem:[#allocation2 + $0x58] sm:$0xff] %v1153
        %s1166 = scalar_lea.vmem %s1, 4
        %v1167 = vld [vmem:[%s1166] sm:$0x3]
        %v1168 = vunpack.c.l.b16 %v388
        %v1169 = vunpack.c.l.b16 %v391
        %v1170 = vunpack.c.l.b16 %v395
        %v1171 = vunpack.c.l.b16 %v398
        %v1172 = vunpack.c.l.b16 %v402
        %v1173 = vunpack.c.l.b16 %v405
        %v1174 = vunpack.c.l.b16 %v409
        %v1175 = vunpack.c.l.b16 %v412
        %v1176 = vunpack.c.l.b16 %v416
        %v1177 = vunpack.c.l.b16 %v419
        %v1178 = vunpack.c.l.b16 %v423
        %v1179 = vunpack.c.l.b16 %v426
        %v1180 = vpack.c.b16 %v1169, %v1168
        %v1181 = vpack.c.b16 %v1171, %v1170
        %v1182 = vpack.c.b16 %v1173, %v1172
        %v1183 = vpack.c.b16 %v1175, %v1174
        %v1184 = vpack.c.b16 %v1177, %v1176
        %v1185 = vpack.c.b16 %v1179, %v1178
        %v1187 = vsel %vm892, %v1180, 0
        %v1190 = vsel %vm892, %v1181, 0
        %v1193 = vsel %vm892, %v1182, 0
        %v1196 = vsel %vm892, %v1183, 0
        %v1199 = vsel %vm892, %v1184, 0
        %v1202 = vsel %vm892, %v1185, 0
        %v1205 = vsel %vm911, %v1167, 0
        %1207 = vmatprep.subr.bf16.mxu0 0
        %1208 = vmatpush1.bf16.msra.mxu0 %v1205
        %1209 = vmatprep.subr.bf16.mxu0 0
        %1210 = vmatpush1.bf16.msra.mxu0 0
        %1211 = vmatprep.subr.bf16.mxu0 0
        %1212 = vmatpush1.bf16.msra.mxu0 0
        %1213 = vmatprep.subr.bf16.mxu0 0
        %1214 = vmatpush1.bf16.msra.mxu0 0
        %1215 = vmatprep.subr.bf16.mxu0 0
        %1216 = vmatpush1.bf16.msra.mxu0 0
        %1217 = vmatprep.subr.bf16.mxu0 0
        %1218 = vmatpush1.bf16.msra.mxu0 0
        %1219 = vmatprep.subr.bf16.mxu0 0
        %1220 = vmatpush1.bf16.msra.mxu0 0
        %1221 = vmatprep.subr.bf16.mxu0 0
        %1222 = vmatpush1.bf16.msra.mxu0 0
        %1223 = vmatprep.subr.bf16.mxu0 0
        %1224 = vmatpush1.bf16.msra.mxu0 0
        %1225 = vmatprep.subr.bf16.mxu0 0
        %1226 = vmatpush1.bf16.msra.mxu0 0
        %1227 = vmatprep.subr.bf16.mxu0 0
        %1228 = vmatpush1.bf16.msra.mxu0 0
        %1229 = vmatprep.subr.bf16.mxu0 0
        %1230 = vmatpush1.bf16.msra.mxu0 0
        %1231 = vmatprep.subr.bf16.mxu0 0
        %1232 = vmatpush1.bf16.msra.mxu0 0
        %1233 = vmatprep.subr.bf16.mxu0 0
        %1234 = vmatpush1.bf16.msra.mxu0 0
        %1235 = vmatprep.subr.bf16.mxu0 0
        %1236 = vmatpush1.bf16.msra.mxu0 0
        %1237 = vmatprep.subr.bf16.mxu0 0
        %1238 = vmatpush1.bf16.msra.mxu0 0
        %1239 = vmatprep.mubr.bf16.mxu0 0
        %1240 = vmatmul.mubr.bf16.gmra.mrb[0].mxu0 %v1187
        %v1241 = vpop.f32.mrb[0].mxu0
        %v1242 = vadd.f32 0.0, %v1241
        %v1243 = vpop.f32.mrb[0].mxu0
        %v1244 = vpop.f32.mrb[0].mxu0
        %v1245 = vadd.f32 0.0, %v1244
        %v1246 = vpop.f32.mrb[0].mxu0
        %1247 = vmatprep.mubr.bf16.mxu0 0
        %1248 = vmatmul.mubr.bf16.gmra.mrb[0].mxu0 %v1190
        %v1249 = vpop.f32.mrb[0].mxu0
        %v1250 = vadd.f32 0.0, %v1249
        %v1251 = vpop.f32.mrb[0].mxu0
        %v1252 = vpop.f32.mrb[0].mxu0
        %v1253 = vadd.f32 0.0, %v1252
        %v1254 = vpop.f32.mrb[0].mxu0
        %1255 = vmatprep.mubr.bf16.mxu0 0
        %1256 = vmatmul.mubr.bf16.gmra.mrb[0].mxu0 %v1193
        %v1257 = vpop.f32.mrb[0].mxu0
        %v1258 = vadd.f32 0.0, %v1257
        %v1259 = vpop.f32.mrb[0].mxu0
        %v1260 = vpop.f32.mrb[0].mxu0
        %v1261 = vadd.f32 0.0, %v1260
        %v1262 = vpop.f32.mrb[0].mxu0
        %1263 = vmatprep.mubr.bf16.mxu0 0
        %1264 = vmatmul.mubr.bf16.gmra.mrb[0].mxu0 %v1196
        %v1265 = vpop.f32.mrb[0].mxu0
        %v1266 = vadd.f32 0.0, %v1265
        %v1267 = vpop.f32.mrb[0].mxu0
        %v1268 = vpop.f32.mrb[0].mxu0
        %v1269 = vadd.f32 0.0, %v1268
        %v1270 = vpop.f32.mrb[0].mxu0
        %1271 = vmatprep.mubr.bf16.mxu0 0
        %1272 = vmatmul.mubr.bf16.gmra.mrb[0].mxu0 %v1199
        %v1273 = vpop.f32.mrb[0].mxu0
        %v1274 = vadd.f32 0.0, %v1273
        %v1275 = vpop.f32.mrb[0].mxu0
        %v1276 = vpop.f32.mrb[0].mxu0
        %v1277 = vadd.f32 0.0, %v1276
        %v1278 = vpop.f32.mrb[0].mxu0
        %1279 = vmatprep.mubr.bf16.mxu0 0
        %1280 = vmatmul.mubr.bf16.gmra.mrb[0].mxu0 %v1202
        %v1281 = vpop.f32.mrb[0].mxu0
        %v1282 = vadd.f32 0.0, %v1281
        %v1283 = vpop.f32.mrb[0].mxu0
        %v1284 = vpop.f32.mrb[0].mxu0
        %v1285 = vadd.f32 0.0, %v1284
        %v1286 = vpop.f32.mrb[0].mxu0
        %1287 = vdwg.mxu0
        %v1288 = vld [vmem:[#allocation2] sm:$0xff]
        %v1289 = vld [vmem:[#allocation2 + $0x8] sm:$0xff]
        %v1290 = vld [vmem:[#allocation2 + $0x10] sm:$0xff]
        %v1291 = vld [vmem:[#allocation2 + $0x18] sm:$0xff]
        %v1292 = vld [vmem:[#allocation2 + $0x20] sm:$0xff]
        %v1293 = vld [vmem:[#allocation2 + $0x28] sm:$0xff]
        %v1294 = vld [vmem:[#allocation2 + $0x30] sm:$0xff]
        %v1295 = vld [vmem:[#allocation2 + $0x38] sm:$0xff]
        %v1296 = vld [vmem:[#allocation2 + $0x40] sm:$0xff]
        %v1297 = vld [vmem:[#allocation2 + $0x48] sm:$0xff]
        %v1298 = vld [vmem:[#allocation2 + $0x50] sm:$0xff]
        %v1299 = vld [vmem:[#allocation2 + $0x58] sm:$0xff]
        %v1300 = vadd.f32 %v1288, %v1242
        %v1301 = vadd.f32 %v1289, %v1245
        %v1302 = vadd.f32 %v1290, %v1250
        %v1303 = vadd.f32 %v1291, %v1253
        %v1304 = vadd.f32 %v1292, %v1258
        %v1305 = vadd.f32 %v1293, %v1261
        %v1306 = vadd.f32 %v1294, %v1266
        %v1307 = vadd.f32 %v1295, %v1269
        %v1308 = vadd.f32 %v1296, %v1274
        %v1309 = vadd.f32 %v1297, %v1277
        %v1310 = vadd.f32 %v1298, %v1282
        %v1311 = vadd.f32 %v1299, %v1285
        %1312 = vst [vmem:[#allocation2] sm:$0xff] %v1300
        %1313 = vst [vmem:[#allocation2 + $0x8] sm:$0xff] %v1301
        %1314 = vst [vmem:[#allocation2 + $0x10] sm:$0xff] %v1302
        %1315 = vst [vmem:[#allocation2 + $0x18] sm:$0xff] %v1303
        %1316 = vst [vmem:[#allocation2 + $0x20] sm:$0xff] %v1304
        %1317 = vst [vmem:[#allocation2 + $0x28] sm:$0xff] %v1305
        %1318 = vst [vmem:[#allocation2 + $0x30] sm:$0xff] %v1306
        %1319 = vst [vmem:[#allocation2 + $0x38] sm:$0xff] %v1307
        %1320 = vst [vmem:[#allocation2 + $0x40] sm:$0xff] %v1308
        %1321 = vst [vmem:[#allocation2 + $0x48] sm:$0xff] %v1309
        %1322 = vst [vmem:[#allocation2 + $0x50] sm:$0xff] %v1310
        %1323 = vst [vmem:[#allocation2 + $0x58] sm:$0xff] %v1311
        %s1324 = scalar_lea.vmem %s1, 6
        %v1325 = vld [vmem:[%s1324] sm:$0x3]
        %v1326 = vunpack.c.l.b16 %v428
        %v1327 = vunpack.c.l.b16 %v429
        %v1328 = vunpack.c.l.b16 %v431
        %v1329 = vunpack.c.l.b16 %v432
        %v1330 = vunpack.c.l.b16 %v434
        %v1331 = vunpack.c.l.b16 %v435
        %v1332 = vunpack.c.l.b16 %v437
        %v1333 = vunpack.c.l.b16 %v438
        %v1334 = vunpack.c.l.b16 %v440
        %v1335 = vunpack.c.l.b16 %v441
        %v1336 = vunpack.c.l.b16 %v443
        %v1337 = vunpack.c.l.b16 %v444
        %v1338 = vpack.c.b16 %v1327, %v1326
        %v1339 = vpack.c.b16 %v1329, %v1328
        %v1340 = vpack.c.b16 %v1331, %v1330
        %v1341 = vpack.c.b16 %v1333, %v1332
        %v1342 = vpack.c.b16 %v1335, %v1334
        %v1343 = vpack.c.b16 %v1337, %v1336
        %v1345 = vsel %vm892, %v1338, 0
        %v1348 = vsel %vm892, %v1339, 0
        %v1351 = vsel %vm892, %v1340, 0
        %v1354 = vsel %vm892, %v1341, 0
        %v1357 = vsel %vm892, %v1342, 0
        %v1360 = vsel %vm892, %v1343, 0
        %v1363 = vsel %vm911, %v1325, 0
        %1365 = vmatprep.subr.bf16.mxu0 0
        %1366 = vmatpush1.bf16.msra.mxu0 %v1363
        %1367 = vmatprep.subr.bf16.mxu0 0
        %1368 = vmatpush1.bf16.msra.mxu0 0
        %1369 = vmatprep.subr.bf16.mxu0 0
        %1370 = vmatpush1.bf16.msra.mxu0 0
        %1371 = vmatprep.subr.bf16.mxu0 0
        %1372 = vmatpush1.bf16.msra.mxu0 0
        %1373 = vmatprep.subr.bf16.mxu0 0
        %1374 = vmatpush1.bf16.msra.mxu0 0
        %1375 = vmatprep.subr.bf16.mxu0 0
        %1376 = vmatpush1.bf16.msra.mxu0 0
        %1377 = vmatprep.subr.bf16.mxu0 0
        %1378 = vmatpush1.bf16.msra.mxu0 0
        %1379 = vmatprep.subr.bf16.mxu0 0
        %1380 = vmatpush1.bf16.msra.mxu0 0
        %1381 = vmatprep.subr.bf16.mxu0 0
        %1382 = vmatpush1.bf16.msra.mxu0 0
        %1383 = vmatprep.subr.bf16.mxu0 0
        %1384 = vmatpush1.bf16.msra.mxu0 0
        %1385 = vmatprep.subr.bf16.mxu0 0
        %1386 = vmatpush1.bf16.msra.mxu0 0
        %1387 = vmatprep.subr.bf16.mxu0 0
        %1388 = vmatpush1.bf16.msra.mxu0 0
        %1389 = vmatprep.subr.bf16.mxu0 0
        %1390 = vmatpush1.bf16.msra.mxu0 0
        %1391 = vmatprep.subr.bf16.mxu0 0
        %1392 = vmatpush1.bf16.msra.mxu0 0
        %1393 = vmatprep.subr.bf16.mxu0 0
        %1394 = vmatpush1.bf16.msra.mxu0 0
        %1395 = vmatprep.subr.bf16.mxu0 0
        %1396 = vmatpush1.bf16.msra.mxu0 0
        %1397 = vmatprep.mubr.bf16.mxu0 0
        %1398 = vmatmul.mubr.bf16.gmra.mrb[0].mxu0 %v1345
        %v1399 = vpop.f32.mrb[0].mxu0
        %v1400 = vadd.f32 0.0, %v1399
        %v1401 = vpop.f32.mrb[0].mxu0
        %v1402 = vpop.f32.mrb[0].mxu0
        %v1403 = vadd.f32 0.0, %v1402
        %v1404 = vpop.f32.mrb[0].mxu0
        %1405 = vmatprep.mubr.bf16.mxu0 0
        %1406 = vmatmul.mubr.bf16.gmra.mrb[0].mxu0 %v1348
        %v1407 = vpop.f32.mrb[0].mxu0
        %v1408 = vadd.f32 0.0, %v1407
        %v1409 = vpop.f32.mrb[0].mxu0
        %v1410 = vpop.f32.mrb[0].mxu0
        %v1411 = vadd.f32 0.0, %v1410
        %v1412 = vpop.f32.mrb[0].mxu0
        %1413 = vmatprep.mubr.bf16.mxu0 0
        %1414 = vmatmul.mubr.bf16.gmra.mrb[0].mxu0 %v1351
        %v1415 = vpop.f32.mrb[0].mxu0
        %v1416 = vadd.f32 0.0, %v1415
        %v1417 = vpop.f32.mrb[0].mxu0
        %v1418 = vpop.f32.mrb[0].mxu0
        %v1419 = vadd.f32 0.0, %v1418
        %v1420 = vpop.f32.mrb[0].mxu0
        %1421 = vmatprep.mubr.bf16.mxu0 0
        %1422 = vmatmul.mubr.bf16.gmra.mrb[0].mxu0 %v1354
        %v1423 = vpop.f32.mrb[0].mxu0
        %v1424 = vadd.f32 0.0, %v1423
        %v1425 = vpop.f32.mrb[0].mxu0
        %v1426 = vpop.f32.mrb[0].mxu0
        %v1427 = vadd.f32 0.0, %v1426
        %v1428 = vpop.f32.mrb[0].mxu0
        %1429 = vmatprep.mubr.bf16.mxu0 0
        %1430 = vmatmul.mubr.bf16.gmra.mrb[0].mxu0 %v1357
        %v1431 = vpop.f32.mrb[0].mxu0
        %v1432 = vadd.f32 0.0, %v1431
        %v1433 = vpop.f32.mrb[0].mxu0
        %v1434 = vpop.f32.mrb[0].mxu0
        %v1435 = vadd.f32 0.0, %v1434
        %v1436 = vpop.f32.mrb[0].mxu0
        %1437 = vmatprep.mubr.bf16.mxu0 0
        %1438 = vmatmul.mubr.bf16.gmra.mrb[0].mxu0 %v1360
        %v1439 = vpop.f32.mrb[0].mxu0
        %v1440 = vadd.f32 0.0, %v1439
        %v1441 = vpop.f32.mrb[0].mxu0
        %v1442 = vpop.f32.mrb[0].mxu0
        %v1443 = vadd.f32 0.0, %v1442
        %v1444 = vpop.f32.mrb[0].mxu0
        %1445 = vdwg.mxu0
        %v1446 = vld [vmem:[#allocation2] sm:$0xff]
        %v1447 = vld [vmem:[#allocation2 + $0x8] sm:$0xff]
        %v1448 = vld [vmem:[#allocation2 + $0x10] sm:$0xff]
        %v1449 = vld [vmem:[#allocation2 + $0x18] sm:$0xff]
        %v1450 = vld [vmem:[#allocation2 + $0x20] sm:$0xff]
        %v1451 = vld [vmem:[#allocation2 + $0x28] sm:$0xff]
        %v1452 = vld [vmem:[#allocation2 + $0x30] sm:$0xff]
        %v1453 = vld [vmem:[#allocation2 + $0x38] sm:$0xff]
        %v1454 = vld [vmem:[#allocation2 + $0x40] sm:$0xff]
        %v1455 = vld [vmem:[#allocation2 + $0x48] sm:$0xff]
        %v1456 = vld [vmem:[#allocation2 + $0x50] sm:$0xff]
        %v1457 = vld [vmem:[#allocation2 + $0x58] sm:$0xff]
        %v1458 = vadd.f32 %v1446, %v1400
        %v1459 = vadd.f32 %v1447, %v1403
        %v1460 = vadd.f32 %v1448, %v1408
        %v1461 = vadd.f32 %v1449, %v1411
        %v1462 = vadd.f32 %v1450, %v1416
        %v1463 = vadd.f32 %v1451, %v1419
        %v1464 = vadd.f32 %v1452, %v1424
        %v1465 = vadd.f32 %v1453, %v1427
        %v1466 = vadd.f32 %v1454, %v1432
        %v1467 = vadd.f32 %v1455, %v1435
        %v1468 = vadd.f32 %v1456, %v1440
        %v1469 = vadd.f32 %v1457, %v1443
        %1470 = vst [vmem:[#allocation2] sm:$0xff] %v1458
        %1471 = vst [vmem:[#allocation2 + $0x8] sm:$0xff] %v1459
        %1472 = vst [vmem:[#allocation2 + $0x10] sm:$0xff] %v1460
        %1473 = vst [vmem:[#allocation2 + $0x18] sm:$0xff] %v1461
        %1474 = vst [vmem:[#allocation2 + $0x20] sm:$0xff] %v1462
        %1475 = vst [vmem:[#allocation2 + $0x28] sm:$0xff] %v1463
        %1476 = vst [vmem:[#allocation2 + $0x30] sm:$0xff] %v1464
        %1477 = vst [vmem:[#allocation2 + $0x38] sm:$0xff] %v1465
        %1478 = vst [vmem:[#allocation2 + $0x40] sm:$0xff] %v1466
        %1479 = vst [vmem:[#allocation2 + $0x48] sm:$0xff] %v1467
        %1480 = vst [vmem:[#allocation2 + $0x50] sm:$0xff] %v1468
        %1481 = vst [vmem:[#allocation2 + $0x58] sm:$0xff] %v1469
        %s1482 = scalar_lea.vmem %s1, 8
        %v1483 = vld [vmem:[%s1482] sm:$0x3]
        %v1484 = vunpack.c.l.b16 %v459
        %v1485 = vunpack.c.l.b16 %v469
        %v1486 = vunpack.c.l.b16 %v483
        %v1487 = vunpack.c.l.b16 %v493
        %v1488 = vunpack.c.l.b16 %v507
        %v1489 = vunpack.c.l.b16 %v517
        %v1490 = vunpack.c.l.b16 %v531
        %v1491 = vunpack.c.l.b16 %v541
        %v1492 = vunpack.c.l.b16 %v555
        %v1493 = vunpack.c.l.b16 %v565
        %v1494 = vunpack.c.l.b16 %v579
        %v1495 = vunpack.c.l.b16 %v589
        %v1496 = vpack.c.b16 %v1485, %v1484
        %v1497 = vpack.c.b16 %v1487, %v1486
        %v1498 = vpack.c.b16 %v1489, %v1488
        %v1499 = vpack.c.b16 %v1491, %v1490
        %v1500 = vpack.c.b16 %v1493, %v1492
        %v1501 = vpack.c.b16 %v1495, %v1494
        %v1503 = vsel %vm892, %v1496, 0
        %v1506 = vsel %vm892, %v1497, 0
        %v1509 = vsel %vm892, %v1498, 0
        %v1512 = vsel %vm892, %v1499, 0
        %v1515 = vsel %vm892, %v1500, 0
        %v1518 = vsel %vm892, %v1501, 0
        %v1521 = vsel %vm911, %v1483, 0
        %1523 = vmatprep.subr.bf16.mxu0 0
        %1524 = vmatpush1.bf16.msra.mxu0 %v1521
        %1525 = vmatprep.subr.bf16.mxu0 0
        %1526 = vmatpush1.bf16.msra.mxu0 0
        %1527 = vmatprep.subr.bf16.mxu0 0
        %1528 = vmatpush1.bf16.msra.mxu0 0
        %1529 = vmatprep.subr.bf16.mxu0 0
        %1530 = vmatpush1.bf16.msra.mxu0 0
        %1531 = vmatprep.subr.bf16.mxu0 0
        %1532 = vmatpush1.bf16.msra.mxu0 0
        %1533 = vmatprep.subr.bf16.mxu0 0
        %1534 = vmatpush1.bf16.msra.mxu0 0
        %1535 = vmatprep.subr.bf16.mxu0 0
        %1536 = vmatpush1.bf16.msra.mxu0 0
        %1537 = vmatprep.subr.bf16.mxu0 0
        %1538 = vmatpush1.bf16.msra.mxu0 0
        %1539 = vmatprep.subr.bf16.mxu0 0
        %1540 = vmatpush1.bf16.msra.mxu0 0
        %1541 = vmatprep.subr.bf16.mxu0 0
        %1542 = vmatpush1.bf16.msra.mxu0 0
        %1543 = vmatprep.subr.bf16.mxu0 0
        %1544 = vmatpush1.bf16.msra.mxu0 0
        %1545 = vmatprep.subr.bf16.mxu0 0
        %1546 = vmatpush1.bf16.msra.mxu0 0
        %1547 = vmatprep.subr.bf16.mxu0 0
        %1548 = vmatpush1.bf16.msra.mxu0 0
        %1549 = vmatprep.subr.bf16.mxu0 0
        %1550 = vmatpush1.bf16.msra.mxu0 0
        %1551 = vmatprep.subr.bf16.mxu0 0
        %1552 = vmatpush1.bf16.msra.mxu0 0
        %1553 = vmatprep.subr.bf16.mxu0 0
        %1554 = vmatpush1.bf16.msra.mxu0 0
        %1555 = vmatprep.mubr.bf16.mxu0 0
        %1556 = vmatmul.mubr.bf16.gmra.mrb[0].mxu0 %v1503
        %v1557 = vpop.f32.mrb[0].mxu0
        %v1558 = vadd.f32 0.0, %v1557
        %v1559 = vpop.f32.mrb[0].mxu0
        %v1560 = vpop.f32.mrb[0].mxu0
        %v1561 = vadd.f32 0.0, %v1560
        %v1562 = vpop.f32.mrb[0].mxu0
        %1563 = vmatprep.mubr.bf16.mxu0 0
        %1564 = vmatmul.mubr.bf16.gmra.mrb[0].mxu0 %v1506
        %v1565 = vpop.f32.mrb[0].mxu0
        %v1566 = vadd.f32 0.0, %v1565
        %v1567 = vpop.f32.mrb[0].mxu0
        %v1568 = vpop.f32.mrb[0].mxu0
        %v1569 = vadd.f32 0.0, %v1568
        %v1570 = vpop.f32.mrb[0].mxu0
        %1571 = vmatprep.mubr.bf16.mxu0 0
        %1572 = vmatmul.mubr.bf16.gmra.mrb[0].mxu0 %v1509
        %v1573 = vpop.f32.mrb[0].mxu0
        %v1574 = vadd.f32 0.0, %v1573
        %v1575 = vpop.f32.mrb[0].mxu0
        %v1576 = vpop.f32.mrb[0].mxu0
        %v1577 = vadd.f32 0.0, %v1576
        %v1578 = vpop.f32.mrb[0].mxu0
        %1579 = vmatprep.mubr.bf16.mxu0 0
        %1580 = vmatmul.mubr.bf16.gmra.mrb[0].mxu0 %v1512
        %v1581 = vpop.f32.mrb[0].mxu0
        %v1582 = vadd.f32 0.0, %v1581
        %v1583 = vpop.f32.mrb[0].mxu0
        %v1584 = vpop.f32.mrb[0].mxu0
        %v1585 = vadd.f32 0.0, %v1584
        %v1586 = vpop.f32.mrb[0].mxu0
        %1587 = vmatprep.mubr.bf16.mxu0 0
        %1588 = vmatmul.mubr.bf16.gmra.mrb[0].mxu0 %v1515
        %v1589 = vpop.f32.mrb[0].mxu0
        %v1590 = vadd.f32 0.0, %v1589
        %v1591 = vpop.f32.mrb[0].mxu0
        %v1592 = vpop.f32.mrb[0].mxu0
        %v1593 = vadd.f32 0.0, %v1592
        %v1594 = vpop.f32.mrb[0].mxu0
        %1595 = vmatprep.mubr.bf16.mxu0 0
        %1596 = vmatmul.mubr.bf16.gmra.mrb[0].mxu0 %v1518
        %v1597 = vpop.f32.mrb[0].mxu0
        %v1598 = vadd.f32 0.0, %v1597
        %v1599 = vpop.f32.mrb[0].mxu0
        %v1600 = vpop.f32.mrb[0].mxu0
        %v1601 = vadd.f32 0.0, %v1600
        %v1602 = vpop.f32.mrb[0].mxu0
        %1603 = vdwg.mxu0
        %v1604 = vld [vmem:[#allocation2] sm:$0xff]
        %v1605 = vld [vmem:[#allocation2 + $0x8] sm:$0xff]
        %v1606 = vld [vmem:[#allocation2 + $0x10] sm:$0xff]
        %v1607 = vld [vmem:[#allocation2 + $0x18] sm:$0xff]
        %v1608 = vld [vmem:[#allocation2 + $0x20] sm:$0xff]
        %v1609 = vld [vmem:[#allocation2 + $0x28] sm:$0xff]
        %v1610 = vld [vmem:[#allocation2 + $0x30] sm:$0xff]
        %v1611 = vld [vmem:[#allocation2 + $0x38] sm:$0xff]
        %v1612 = vld [vmem:[#allocation2 + $0x40] sm:$0xff]
        %v1613 = vld [vmem:[#allocation2 + $0x48] sm:$0xff]
        %v1614 = vld [vmem:[#allocation2 + $0x50] sm:$0xff]
        %v1615 = vld [vmem:[#allocation2 + $0x58] sm:$0xff]
        %v1616 = vadd.f32 %v1604, %v1558
        %v1617 = vadd.f32 %v1605, %v1561
        %v1618 = vadd.f32 %v1606, %v1566
        %v1619 = vadd.f32 %v1607, %v1569
        %v1620 = vadd.f32 %v1608, %v1574
        %v1621 = vadd.f32 %v1609, %v1577
        %v1622 = vadd.f32 %v1610, %v1582
        %v1623 = vadd.f32 %v1611, %v1585
        %v1624 = vadd.f32 %v1612, %v1590
        %v1625 = vadd.f32 %v1613, %v1593
        %v1626 = vadd.f32 %v1614, %v1598
        %v1627 = vadd.f32 %v1615, %v1601
        %1628 = vst [vmem:[#allocation2] sm:$0xff] %v1616
        %1629 = vst [vmem:[#allocation2 + $0x8] sm:$0xff] %v1617
        %1630 = vst [vmem:[#allocation2 + $0x10] sm:$0xff] %v1618
        %1631 = vst [vmem:[#allocation2 + $0x18] sm:$0xff] %v1619
        %1632 = vst [vmem:[#allocation2 + $0x20] sm:$0xff] %v1620
        %1633 = vst [vmem:[#allocation2 + $0x28] sm:$0xff] %v1621
        %1634 = vst [vmem:[#allocation2 + $0x30] sm:$0xff] %v1622
        %1635 = vst [vmem:[#allocation2 + $0x38] sm:$0xff] %v1623
        %1636 = vst [vmem:[#allocation2 + $0x40] sm:$0xff] %v1624
        %1637 = vst [vmem:[#allocation2 + $0x48] sm:$0xff] %v1625
        %1638 = vst [vmem:[#allocation2 + $0x50] sm:$0xff] %v1626
        %1639 = vst [vmem:[#allocation2 + $0x58] sm:$0xff] %v1627
        %s1640 = scalar_lea.vmem %s1, 10
        %v1641 = vld [vmem:[%s1640] sm:$0x3]
        %v1642 = vunpack.c.l.b16 %v611
        %v1643 = vunpack.c.l.b16 %v614
        %v1644 = vunpack.c.l.b16 %v618
        %v1645 = vunpack.c.l.b16 %v621
        %v1646 = vunpack.c.l.b16 %v625
        %v1647 = vunpack.c.l.b16 %v628
        %v1648 = vunpack.c.l.b16 %v632
        %v1649 = vunpack.c.l.b16 %v635
        %v1650 = vunpack.c.l.b16 %v639
        %v1651 = vunpack.c.l.b16 %v642
        %v1652 = vunpack.c.l.b16 %v646
        %v1653 = vunpack.c.l.b16 %v649
        %v1654 = vpack.c.b16 %v1643, %v1642
        %v1655 = vpack.c.b16 %v1645, %v1644
        %v1656 = vpack.c.b16 %v1647, %v1646
        %v1657 = vpack.c.b16 %v1649, %v1648
        %v1658 = vpack.c.b16 %v1651, %v1650
        %v1659 = vpack.c.b16 %v1653, %v1652
        %v1661 = vsel %vm892, %v1654, 0
        %v1664 = vsel %vm892, %v1655, 0
        %v1667 = vsel %vm892, %v1656, 0
        %v1670 = vsel %vm892, %v1657, 0
        %v1673 = vsel %vm892, %v1658, 0
        %v1676 = vsel %vm892, %v1659, 0
        %v1679 = vsel %vm911, %v1641, 0
        %1681 = vmatprep.subr.bf16.mxu0 0
        %1682 = vmatpush1.bf16.msra.mxu0 %v1679
        %1683 = vmatprep.subr.bf16.mxu0 0
        %1684 = vmatpush1.bf16.msra.mxu0 0
        %1685 = vmatprep.subr.bf16.mxu0 0
        %1686 = vmatpush1.bf16.msra.mxu0 0
        %1687 = vmatprep.subr.bf16.mxu0 0
        %1688 = vmatpush1.bf16.msra.mxu0 0
        %1689 = vmatprep.subr.bf16.mxu0 0
        %1690 = vmatpush1.bf16.msra.mxu0 0
        %1691 = vmatprep.subr.bf16.mxu0 0
        %1692 = vmatpush1.bf16.msra.mxu0 0
        %1693 = vmatprep.subr.bf16.mxu0 0
        %1694 = vmatpush1.bf16.msra.mxu0 0
        %1695 = vmatprep.subr.bf16.mxu0 0
        %1696 = vmatpush1.bf16.msra.mxu0 0
        %1697 = vmatprep.subr.bf16.mxu0 0
        %1698 = vmatpush1.bf16.msra.mxu0 0
        %1699 = vmatprep.subr.bf16.mxu0 0
        %1700 = vmatpush1.bf16.msra.mxu0 0
        %1701 = vmatprep.subr.bf16.mxu0 0
        %1702 = vmatpush1.bf16.msra.mxu0 0
        %1703 = vmatprep.subr.bf16.mxu0 0
        %1704 = vmatpush1.bf16.msra.mxu0 0
        %1705 = vmatprep.subr.bf16.mxu0 0
        %1706 = vmatpush1.bf16.msra.mxu0 0
        %1707 = vmatprep.subr.bf16.mxu0 0
        %1708 = vmatpush1.bf16.msra.mxu0 0
        %1709 = vmatprep.subr.bf16.mxu0 0
        %1710 = vmatpush1.bf16.msra.mxu0 0
        %1711 = vmatprep.subr.bf16.mxu0 0
        %1712 = vmatpush1.bf16.msra.mxu0 0
        %1713 = vmatprep.mubr.bf16.mxu0 0
        %1714 = vmatmul.mubr.bf16.gmra.mrb[0].mxu0 %v1661
        %v1715 = vpop.f32.mrb[0].mxu0
        %v1716 = vadd.f32 0.0, %v1715
        %v1717 = vpop.f32.mrb[0].mxu0
        %v1718 = vpop.f32.mrb[0].mxu0
        %v1719 = vadd.f32 0.0, %v1718
        %v1720 = vpop.f32.mrb[0].mxu0
        %1721 = vmatprep.mubr.bf16.mxu0 0
        %1722 = vmatmul.mubr.bf16.gmra.mrb[0].mxu0 %v1664
        %v1723 = vpop.f32.mrb[0].mxu0
        %v1724 = vadd.f32 0.0, %v1723
        %v1725 = vpop.f32.mrb[0].mxu0
        %v1726 = vpop.f32.mrb[0].mxu0
        %v1727 = vadd.f32 0.0, %v1726
        %v1728 = vpop.f32.mrb[0].mxu0
        %1729 = vmatprep.mubr.bf16.mxu0 0
        %1730 = vmatmul.mubr.bf16.gmra.mrb[0].mxu0 %v1667
        %v1731 = vpop.f32.mrb[0].mxu0
        %v1732 = vadd.f32 0.0, %v1731
        %v1733 = vpop.f32.mrb[0].mxu0
        %v1734 = vpop.f32.mrb[0].mxu0
        %v1735 = vadd.f32 0.0, %v1734
        %v1736 = vpop.f32.mrb[0].mxu0
        %1737 = vmatprep.mubr.bf16.mxu0 0
        %1738 = vmatmul.mubr.bf16.gmra.mrb[0].mxu0 %v1670
        %v1739 = vpop.f32.mrb[0].mxu0
        %v1740 = vadd.f32 0.0, %v1739
        %v1741 = vpop.f32.mrb[0].mxu0
        %v1742 = vpop.f32.mrb[0].mxu0
        %v1743 = vadd.f32 0.0, %v1742
        %v1744 = vpop.f32.mrb[0].mxu0
        %1745 = vmatprep.mubr.bf16.mxu0 0
        %1746 = vmatmul.mubr.bf16.gmra.mrb[0].mxu0 %v1673
        %v1747 = vpop.f32.mrb[0].mxu0
        %v1748 = vadd.f32 0.0, %v1747
        %v1749 = vpop.f32.mrb[0].mxu0
        %v1750 = vpop.f32.mrb[0].mxu0
        %v1751 = vadd.f32 0.0, %v1750
        %v1752 = vpop.f32.mrb[0].mxu0
        %1753 = vmatprep.mubr.bf16.mxu0 0
        %1754 = vmatmul.mubr.bf16.gmra.mrb[0].mxu0 %v1676
        %v1755 = vpop.f32.mrb[0].mxu0
        %v1756 = vadd.f32 0.0, %v1755
        %v1757 = vpop.f32.mrb[0].mxu0
        %v1758 = vpop.f32.mrb[0].mxu0
        %v1759 = vadd.f32 0.0, %v1758
        %v1760 = vpop.f32.mrb[0].mxu0
        %1761 = vdwg.mxu0
        %v1762 = vld [vmem:[#allocation2] sm:$0xff]
        %v1763 = vld [vmem:[#allocation2 + $0x8] sm:$0xff]
        %v1764 = vld [vmem:[#allocation2 + $0x10] sm:$0xff]
        %v1765 = vld [vmem:[#allocation2 + $0x18] sm:$0xff]
        %v1766 = vld [vmem:[#allocation2 + $0x20] sm:$0xff]
        %v1767 = vld [vmem:[#allocation2 + $0x28] sm:$0xff]
        %v1768 = vld [vmem:[#allocation2 + $0x30] sm:$0xff]
        %v1769 = vld [vmem:[#allocation2 + $0x38] sm:$0xff]
        %v1770 = vld [vmem:[#allocation2 + $0x40] sm:$0xff]
        %v1771 = vld [vmem:[#allocation2 + $0x48] sm:$0xff]
        %v1772 = vld [vmem:[#allocation2 + $0x50] sm:$0xff]
        %v1773 = vld [vmem:[#allocation2 + $0x58] sm:$0xff]
        %v1774 = vadd.f32 %v1762, %v1716
        %v1775 = vadd.f32 %v1763, %v1719
        %v1776 = vadd.f32 %v1764, %v1724
        %v1777 = vadd.f32 %v1765, %v1727
        %v1778 = vadd.f32 %v1766, %v1732
        %v1779 = vadd.f32 %v1767, %v1735
        %v1780 = vadd.f32 %v1768, %v1740
        %v1781 = vadd.f32 %v1769, %v1743
        %v1782 = vadd.f32 %v1770, %v1748
        %v1783 = vadd.f32 %v1771, %v1751
        %v1784 = vadd.f32 %v1772, %v1756
        %v1785 = vadd.f32 %v1773, %v1759
        %1786 = vst [vmem:[#allocation2] sm:$0xff] %v1774
        %1787 = vst [vmem:[#allocation2 + $0x8] sm:$0xff] %v1775
        %1788 = vst [vmem:[#allocation2 + $0x10] sm:$0xff] %v1776
        %1789 = vst [vmem:[#allocation2 + $0x18] sm:$0xff] %v1777
        %1790 = vst [vmem:[#allocation2 + $0x20] sm:$0xff] %v1778
        %1791 = vst [vmem:[#allocation2 + $0x28] sm:$0xff] %v1779
        %1792 = vst [vmem:[#allocation2 + $0x30] sm:$0xff] %v1780
        %1793 = vst [vmem:[#allocation2 + $0x38] sm:$0xff] %v1781
        %1794 = vst [vmem:[#allocation2 + $0x40] sm:$0xff] %v1782
        %1795 = vst [vmem:[#allocation2 + $0x48] sm:$0xff] %v1783
        %1796 = vst [vmem:[#allocation2 + $0x50] sm:$0xff] %v1784
        %1797 = vst [vmem:[#allocation2 + $0x58] sm:$0xff] %v1785
        %s1798 = scalar_lea.vmem %s1, 12
        %v1799 = vld [vmem:[%s1798] sm:$0x3]
        %v1800 = vunpack.c.l.b16 %v651
        %v1801 = vunpack.c.l.b16 %v652
        %v1802 = vunpack.c.l.b16 %v654
        %v1803 = vunpack.c.l.b16 %v655
        %v1804 = vunpack.c.l.b16 %v657
        %v1805 = vunpack.c.l.b16 %v658
        %v1806 = vunpack.c.l.b16 %v660
        %v1807 = vunpack.c.l.b16 %v661
        %v1808 = vunpack.c.l.b16 %v663
        %v1809 = vunpack.c.l.b16 %v664
        %v1810 = vunpack.c.l.b16 %v666
        %v1811 = vunpack.c.l.b16 %v667
        %v1812 = vpack.c.b16 %v1801, %v1800
        %v1813 = vpack.c.b16 %v1803, %v1802
        %v1814 = vpack.c.b16 %v1805, %v1804
        %v1815 = vpack.c.b16 %v1807, %v1806
        %v1816 = vpack.c.b16 %v1809, %v1808
        %v1817 = vpack.c.b16 %v1811, %v1810
        %v1819 = vsel %vm892, %v1812, 0
        %v1822 = vsel %vm892, %v1813, 0
        %v1825 = vsel %vm892, %v1814, 0
        %v1828 = vsel %vm892, %v1815, 0
        %v1831 = vsel %vm892, %v1816, 0
        %v1834 = vsel %vm892, %v1817, 0
        %v1837 = vsel %vm911, %v1799, 0
        %1839 = vmatprep.subr.bf16.mxu0 0
        %1840 = vmatpush1.bf16.msra.mxu0 %v1837
        %1841 = vmatprep.subr.bf16.mxu0 0
        %1842 = vmatpush1.bf16.msra.mxu0 0
        %1843 = vmatprep.subr.bf16.mxu0 0
        %1844 = vmatpush1.bf16.msra.mxu0 0
        %1845 = vmatprep.subr.bf16.mxu0 0
        %1846 = vmatpush1.bf16.msra.mxu0 0
        %1847 = vmatprep.subr.bf16.mxu0 0
        %1848 = vmatpush1.bf16.msra.mxu0 0
        %1849 = vmatprep.subr.bf16.mxu0 0
        %1850 = vmatpush1.bf16.msra.mxu0 0
        %1851 = vmatprep.subr.bf16.mxu0 0
        %1852 = vmatpush1.bf16.msra.mxu0 0
        %1853 = vmatprep.subr.bf16.mxu0 0
        %1854 = vmatpush1.bf16.msra.mxu0 0
        %1855 = vmatprep.subr.bf16.mxu0 0
        %1856 = vmatpush1.bf16.msra.mxu0 0
        %1857 = vmatprep.subr.bf16.mxu0 0
        %1858 = vmatpush1.bf16.msra.mxu0 0
        %1859 = vmatprep.subr.bf16.mxu0 0
        %1860 = vmatpush1.bf16.msra.mxu0 0
        %1861 = vmatprep.subr.bf16.mxu0 0
        %1862 = vmatpush1.bf16.msra.mxu0 0
        %1863 = vmatprep.subr.bf16.mxu0 0
        %1864 = vmatpush1.bf16.msra.mxu0 0
        %1865 = vmatprep.subr.bf16.mxu0 0
        %1866 = vmatpush1.bf16.msra.mxu0 0
        %1867 = vmatprep.subr.bf16.mxu0 0
        %1868 = vmatpush1.bf16.msra.mxu0 0
        %1869 = vmatprep.subr.bf16.mxu0 0
        %1870 = vmatpush1.bf16.msra.mxu0 0
        %1871 = vmatprep.mubr.bf16.mxu0 0
        %1872 = vmatmul.mubr.bf16.gmra.mrb[0].mxu0 %v1819
        %v1873 = vpop.f32.mrb[0].mxu0
        %v1874 = vadd.f32 0.0, %v1873
        %v1875 = vpop.f32.mrb[0].mxu0
        %v1876 = vpop.f32.mrb[0].mxu0
        %v1877 = vadd.f32 0.0, %v1876
        %v1878 = vpop.f32.mrb[0].mxu0
        %1879 = vmatprep.mubr.bf16.mxu0 0
        %1880 = vmatmul.mubr.bf16.gmra.mrb[0].mxu0 %v1822
        %v1881 = vpop.f32.mrb[0].mxu0
        %v1882 = vadd.f32 0.0, %v1881
        %v1883 = vpop.f32.mrb[0].mxu0
        %v1884 = vpop.f32.mrb[0].mxu0
        %v1885 = vadd.f32 0.0, %v1884
        %v1886 = vpop.f32.mrb[0].mxu0
        %1887 = vmatprep.mubr.bf16.mxu0 0
        %1888 = vmatmul.mubr.bf16.gmra.mrb[0].mxu0 %v1825
        %v1889 = vpop.f32.mrb[0].mxu0
        %v1890 = vadd.f32 0.0, %v1889
        %v1891 = vpop.f32.mrb[0].mxu0
        %v1892 = vpop.f32.mrb[0].mxu0
        %v1893 = vadd.f32 0.0, %v1892
        %v1894 = vpop.f32.mrb[0].mxu0
        %1895 = vmatprep.mubr.bf16.mxu0 0
        %1896 = vmatmul.mubr.bf16.gmra.mrb[0].mxu0 %v1828
        %v1897 = vpop.f32.mrb[0].mxu0
        %v1898 = vadd.f32 0.0, %v1897
        %v1899 = vpop.f32.mrb[0].mxu0
        %v1900 = vpop.f32.mrb[0].mxu0
        %v1901 = vadd.f32 0.0, %v1900
        %v1902 = vpop.f32.mrb[0].mxu0
        %1903 = vmatprep.mubr.bf16.mxu0 0
        %1904 = vmatmul.mubr.bf16.gmra.mrb[0].mxu0 %v1831
        %v1905 = vpop.f32.mrb[0].mxu0
        %v1906 = vadd.f32 0.0, %v1905
        %v1907 = vpop.f32.mrb[0].mxu0
        %v1908 = vpop.f32.mrb[0].mxu0
        %v1909 = vadd.f32 0.0, %v1908
        %v1910 = vpop.f32.mrb[0].mxu0
        %1911 = vmatprep.mubr.bf16.mxu0 0
        %1912 = vmatmul.mubr.bf16.gmra.mrb[0].mxu0 %v1834
        %v1913 = vpop.f32.mrb[0].mxu0
        %v1914 = vadd.f32 0.0, %v1913
        %v1915 = vpop.f32.mrb[0].mxu0
        %v1916 = vpop.f32.mrb[0].mxu0
        %v1917 = vadd.f32 0.0, %v1916
        %v1918 = vpop.f32.mrb[0].mxu0
        %1919 = vdwg.mxu0
        %v1920 = vld [vmem:[#allocation2] sm:$0xff]
        %v1921 = vld [vmem:[#allocation2 + $0x8] sm:$0xff]
        %v1922 = vld [vmem:[#allocation2 + $0x10] sm:$0xff]
        %v1923 = vld [vmem:[#allocation2 + $0x18] sm:$0xff]
        %v1924 = vld [vmem:[#allocation2 + $0x20] sm:$0xff]
        %v1925 = vld [vmem:[#allocation2 + $0x28] sm:$0xff]
        %v1926 = vld [vmem:[#allocation2 + $0x30] sm:$0xff]
        %v1927 = vld [vmem:[#allocation2 + $0x38] sm:$0xff]
        %v1928 = vld [vmem:[#allocation2 + $0x40] sm:$0xff]
        %v1929 = vld [vmem:[#allocation2 + $0x48] sm:$0xff]
        %v1930 = vld [vmem:[#allocation2 + $0x50] sm:$0xff]
        %v1931 = vld [vmem:[#allocation2 + $0x58] sm:$0xff]
        %v1932 = vadd.f32 %v1920, %v1874
        %v1933 = vadd.f32 %v1921, %v1877
        %v1934 = vadd.f32 %v1922, %v1882
        %v1935 = vadd.f32 %v1923, %v1885
        %v1936 = vadd.f32 %v1924, %v1890
        %v1937 = vadd.f32 %v1925, %v1893
        %v1938 = vadd.f32 %v1926, %v1898
        %v1939 = vadd.f32 %v1927, %v1901
        %v1940 = vadd.f32 %v1928, %v1906
        %v1941 = vadd.f32 %v1929, %v1909
        %v1942 = vadd.f32 %v1930, %v1914
        %v1943 = vadd.f32 %v1931, %v1917
        %1944 = vst [vmem:[#allocation2] sm:$0xff] %v1932
        %1945 = vst [vmem:[#allocation2 + $0x8] sm:$0xff] %v1933
        %1946 = vst [vmem:[#allocation2 + $0x10] sm:$0xff] %v1934
        %1947 = vst [vmem:[#allocation2 + $0x18] sm:$0xff] %v1935
        %1948 = vst [vmem:[#allocation2 + $0x20] sm:$0xff] %v1936
        %1949 = vst [vmem:[#allocation2 + $0x28] sm:$0xff] %v1937
        %1950 = vst [vmem:[#allocation2 + $0x30] sm:$0xff] %v1938
        %1951 = vst [vmem:[#allocation2 + $0x38] sm:$0xff] %v1939
        %1952 = vst [vmem:[#allocation2 + $0x40] sm:$0xff] %v1940
        %1953 = vst [vmem:[#allocation2 + $0x48] sm:$0xff] %v1941
        %1954 = vst [vmem:[#allocation2 + $0x50] sm:$0xff] %v1942
        %1955 = vst [vmem:[#allocation2 + $0x58] sm:$0xff] %v1943
        %s1956 = scalar_lea.vmem %s1, 14
        %v1957 = vld [vmem:[%s1956] sm:$0x3]
        %v1958 = vunpack.c.l.b16 %v682
        %v1959 = vunpack.c.l.b16 %v692
        %v1960 = vunpack.c.l.b16 %v706
        %v1961 = vunpack.c.l.b16 %v716
        %v1962 = vunpack.c.l.b16 %v730
        %v1963 = vunpack.c.l.b16 %v740
        %v1964 = vunpack.c.l.b16 %v754
        %v1965 = vunpack.c.l.b16 %v764
        %v1966 = vunpack.c.l.b16 %v778
        %v1967 = vunpack.c.l.b16 %v788
        %v1968 = vunpack.c.l.b16 %v802
        %v1969 = vunpack.c.l.b16 %v812
        %v1970 = vpack.c.b16 %v1959, %v1958
        %v1971 = vpack.c.b16 %v1961, %v1960
        %v1972 = vpack.c.b16 %v1963, %v1962
        %v1973 = vpack.c.b16 %v1965, %v1964
        %v1974 = vpack.c.b16 %v1967, %v1966
        %v1975 = vpack.c.b16 %v1969, %v1968
        %v1977 = vsel %vm892, %v1970, 0
        %v1980 = vsel %vm892, %v1971, 0
        %v1983 = vsel %vm892, %v1972, 0
        %v1986 = vsel %vm892, %v1973, 0
        %v1989 = vsel %vm892, %v1974, 0
        %v1992 = vsel %vm892, %v1975, 0
        %v1995 = vsel %vm911, %v1957, 0
        %1997 = vmatprep.subr.bf16.mxu0 0
        %1998 = vmatpush1.bf16.msra.mxu0 %v1995
        %1999 = vmatprep.subr.bf16.mxu0 0
        %2000 = vmatpush1.bf16.msra.mxu0 0
        %2001 = vmatprep.subr.bf16.mxu0 0
        %2002 = vmatpush1.bf16.msra.mxu0 0
        %2003 = vmatprep.subr.bf16.mxu0 0
        %2004 = vmatpush1.bf16.msra.mxu0 0
        %2005 = vmatprep.subr.bf16.mxu0 0
        %2006 = vmatpush1.bf16.msra.mxu0 0
        %2007 = vmatprep.subr.bf16.mxu0 0
        %2008 = vmatpush1.bf16.msra.mxu0 0
        %2009 = vmatprep.subr.bf16.mxu0 0
        %2010 = vmatpush1.bf16.msra.mxu0 0
        %2011 = vmatprep.subr.bf16.mxu0 0
        %2012 = vmatpush1.bf16.msra.mxu0 0
        %2013 = vmatprep.subr.bf16.mxu0 0
        %2014 = vmatpush1.bf16.msra.mxu0 0
        %2015 = vmatprep.subr.bf16.mxu0 0
        %2016 = vmatpush1.bf16.msra.mxu0 0
        %2017 = vmatprep.subr.bf16.mxu0 0
        %2018 = vmatpush1.bf16.msra.mxu0 0
        %2019 = vmatprep.subr.bf16.mxu0 0
        %2020 = vmatpush1.bf16.msra.mxu0 0
        %2021 = vmatprep.subr.bf16.mxu0 0
        %2022 = vmatpush1.bf16.msra.mxu0 0
        %2023 = vmatprep.subr.bf16.mxu0 0
        %2024 = vmatpush1.bf16.msra.mxu0 0
        %2025 = vmatprep.subr.bf16.mxu0 0
        %2026 = vmatpush1.bf16.msra.mxu0 0
        %2027 = vmatprep.subr.bf16.mxu0 0
        %2028 = vmatpush1.bf16.msra.mxu0 0
        %2029 = vmatprep.mubr.bf16.mxu0 0
        %2030 = vmatmul.mubr.bf16.gmra.mrb[0].mxu0 %v1977
        %v2031 = vpop.f32.mrb[0].mxu0
        %v2032 = vadd.f32 0.0, %v2031
        %v2033 = vpop.f32.mrb[0].mxu0
        %v2034 = vpop.f32.mrb[0].mxu0
        %v2035 = vadd.f32 0.0, %v2034
        %v2036 = vpop.f32.mrb[0].mxu0
        %2037 = vmatprep.mubr.bf16.mxu0 0
        %2038 = vmatmul.mubr.bf16.gmra.mrb[0].mxu0 %v1980
        %v2039 = vpop.f32.mrb[0].mxu0
        %v2040 = vadd.f32 0.0, %v2039
        %v2041 = vpop.f32.mrb[0].mxu0
        %v2042 = vpop.f32.mrb[0].mxu0
        %v2043 = vadd.f32 0.0, %v2042
        %v2044 = vpop.f32.mrb[0].mxu0
        %2045 = vmatprep.mubr.bf16.mxu0 0
        %2046 = vmatmul.mubr.bf16.gmra.mrb[0].mxu0 %v1983
        %v2047 = vpop.f32.mrb[0].mxu0
        %v2048 = vadd.f32 0.0, %v2047
        %v2049 = vpop.f32.mrb[0].mxu0
        %v2050 = vpop.f32.mrb[0].mxu0
        %v2051 = vadd.f32 0.0, %v2050
        %v2052 = vpop.f32.mrb[0].mxu0
        %2053 = vmatprep.mubr.bf16.mxu0 0
        %2054 = vmatmul.mubr.bf16.gmra.mrb[0].mxu0 %v1986
        %v2055 = vpop.f32.mrb[0].mxu0
        %v2056 = vadd.f32 0.0, %v2055
        %v2057 = vpop.f32.mrb[0].mxu0
        %v2058 = vpop.f32.mrb[0].mxu0
        %v2059 = vadd.f32 0.0, %v2058
        %v2060 = vpop.f32.mrb[0].mxu0
        %2061 = vmatprep.mubr.bf16.mxu0 0
        %2062 = vmatmul.mubr.bf16.gmra.mrb[0].mxu0 %v1989
        %v2063 = vpop.f32.mrb[0].mxu0
        %v2064 = vadd.f32 0.0, %v2063
        %v2065 = vpop.f32.mrb[0].mxu0
        %v2066 = vpop.f32.mrb[0].mxu0
        %v2067 = vadd.f32 0.0, %v2066
        %v2068 = vpop.f32.mrb[0].mxu0
        %2069 = vmatprep.mubr.bf16.mxu0 0
        %2070 = vmatmul.mubr.bf16.gmra.mrb[0].mxu0 %v1992
        %v2071 = vpop.f32.mrb[0].mxu0
        %v2072 = vadd.f32 0.0, %v2071
        %v2073 = vpop.f32.mrb[0].mxu0
        %v2074 = vpop.f32.mrb[0].mxu0
        %v2075 = vadd.f32 0.0, %v2074
        %v2076 = vpop.f32.mrb[0].mxu0
        %2077 = vdwg.mxu0
        %v2078 = vld [vmem:[#allocation2] sm:$0xff]
        %v2079 = vld [vmem:[#allocation2 + $0x8] sm:$0xff]
        %v2080 = vld [vmem:[#allocation2 + $0x10] sm:$0xff]
        %v2081 = vld [vmem:[#allocation2 + $0x18] sm:$0xff]
        %v2082 = vld [vmem:[#allocation2 + $0x20] sm:$0xff]
        %v2083 = vld [vmem:[#allocation2 + $0x28] sm:$0xff]
        %v2084 = vld [vmem:[#allocation2 + $0x30] sm:$0xff]
        %v2085 = vld [vmem:[#allocation2 + $0x38] sm:$0xff]
        %v2086 = vld [vmem:[#allocation2 + $0x40] sm:$0xff]
        %v2087 = vld [vmem:[#allocation2 + $0x48] sm:$0xff]
        %v2088 = vld [vmem:[#allocation2 + $0x50] sm:$0xff]
        %v2089 = vld [vmem:[#allocation2 + $0x58] sm:$0xff]
        %v2090 = vadd.f32 %v2078, %v2032
        %v2091 = vadd.f32 %v2079, %v2035
        %v2092 = vadd.f32 %v2080, %v2040
        %v2093 = vadd.f32 %v2081, %v2043
        %v2094 = vadd.f32 %v2082, %v2048
        %v2095 = vadd.f32 %v2083, %v2051
        %v2096 = vadd.f32 %v2084, %v2056
        %v2097 = vadd.f32 %v2085, %v2059
        %v2098 = vadd.f32 %v2086, %v2064
        %v2099 = vadd.f32 %v2087, %v2067
        %v2100 = vadd.f32 %v2088, %v2072
        %v2101 = vadd.f32 %v2089, %v2075
        %2102 = vst [vmem:[#allocation2] sm:$0xff] %v2090
        %2103 = vst [vmem:[#allocation2 + $0x8] sm:$0xff] %v2091
        %2104 = vst [vmem:[#allocation2 + $0x10] sm:$0xff] %v2092
        %2105 = vst [vmem:[#allocation2 + $0x18] sm:$0xff] %v2093
        %2106 = vst [vmem:[#allocation2 + $0x20] sm:$0xff] %v2094
        %2107 = vst [vmem:[#allocation2 + $0x28] sm:$0xff] %v2095
        %2108 = vst [vmem:[#allocation2 + $0x30] sm:$0xff] %v2096
        %2109 = vst [vmem:[#allocation2 + $0x38] sm:$0xff] %v2097
        %2110 = vst [vmem:[#allocation2 + $0x40] sm:$0xff] %v2098
        %2111 = vst [vmem:[#allocation2 + $0x48] sm:$0xff] %v2099
        %2112 = vst [vmem:[#allocation2 + $0x50] sm:$0xff] %v2100
        %2113 = vst [vmem:[#allocation2 + $0x58] sm:$0xff] %v2101
        %s2114 = scalar_lea.vmem %s1, 16
        %v2115 = vld [vmem:[%s2114] sm:$0x3]
        %v2116 = vunpack.c.l.b16 %v834
        %v2117 = vunpack.c.l.b16 %v837
        %v2118 = vunpack.c.l.b16 %v841
        %v2119 = vunpack.c.l.b16 %v844
        %v2120 = vunpack.c.l.b16 %v848
        %v2121 = vunpack.c.l.b16 %v851
        %v2122 = vunpack.c.l.b16 %v855
        %v2123 = vunpack.c.l.b16 %v858
        %v2124 = vunpack.c.l.b16 %v862
        %v2125 = vunpack.c.l.b16 %v865
        %v2126 = vunpack.c.l.b16 %v869
        %v2127 = vunpack.c.l.b16 %v872
        %v2128 = vpack.c.b16 %v2117, %v2116
        %v2129 = vpack.c.b16 %v2119, %v2118
        %v2130 = vpack.c.b16 %v2121, %v2120
        %v2131 = vpack.c.b16 %v2123, %v2122
        %v2132 = vpack.c.b16 %v2125, %v2124
        %v2133 = vpack.c.b16 %v2127, %v2126
        %v2135 = vsel %vm892, %v2128, 0
        %v2138 = vsel %vm892, %v2129, 0
        %v2141 = vsel %vm892, %v2130, 0
        %v2144 = vsel %vm892, %v2131, 0
        %v2147 = vsel %vm892, %v2132, 0
        %v2150 = vsel %vm892, %v2133, 0
        %v2153 = vsel %vm911, %v2115, 0
        %2155 = vmatprep.subr.bf16.mxu0 0
        %2156 = vmatpush1.bf16.msra.mxu0 %v2153
        %2157 = vmatprep.subr.bf16.mxu0 0
        %2158 = vmatpush1.bf16.msra.mxu0 0
        %2159 = vmatprep.subr.bf16.mxu0 0
        %2160 = vmatpush1.bf16.msra.mxu0 0
        %2161 = vmatprep.subr.bf16.mxu0 0
        %2162 = vmatpush1.bf16.msra.mxu0 0
        %2163 = vmatprep.subr.bf16.mxu0 0
        %2164 = vmatpush1.bf16.msra.mxu0 0
        %2165 = vmatprep.subr.bf16.mxu0 0
        %2166 = vmatpush1.bf16.msra.mxu0 0
        %2167 = vmatprep.subr.bf16.mxu0 0
        %2168 = vmatpush1.bf16.msra.mxu0 0
        %2169 = vmatprep.subr.bf16.mxu0 0
        %2170 = vmatpush1.bf16.msra.mxu0 0
        %2171 = vmatprep.subr.bf16.mxu0 0
        %2172 = vmatpush1.bf16.msra.mxu0 0
        %2173 = vmatprep.subr.bf16.mxu0 0
        %2174 = vmatpush1.bf16.msra.mxu0 0
        %2175 = vmatprep.subr.bf16.mxu0 0
        %2176 = vmatpush1.bf16.msra.mxu0 0
        %2177 = vmatprep.subr.bf16.mxu0 0
        %2178 = vmatpush1.bf16.msra.mxu0 0
        %2179 = vmatprep.subr.bf16.mxu0 0
        %2180 = vmatpush1.bf16.msra.mxu0 0
        %2181 = vmatprep.subr.bf16.mxu0 0
        %2182 = vmatpush1.bf16.msra.mxu0 0
        %2183 = vmatprep.subr.bf16.mxu0 0
        %2184 = vmatpush1.bf16.msra.mxu0 0
        %2185 = vmatprep.subr.bf16.mxu0 0
        %2186 = vmatpush1.bf16.msra.mxu0 0
        %2187 = vmatprep.mubr.bf16.mxu0 0
        %2188 = vmatmul.mubr.bf16.gmra.mrb[0].mxu0 %v2135
        %v2189 = vpop.f32.mrb[0].mxu0
        %v2190 = vadd.f32 0.0, %v2189
        %v2191 = vpop.f32.mrb[0].mxu0
        %v2192 = vpop.f32.mrb[0].mxu0
        %v2193 = vadd.f32 0.0, %v2192
        %v2194 = vpop.f32.mrb[0].mxu0
        %2195 = vmatprep.mubr.bf16.mxu0 0
        %2196 = vmatmul.mubr.bf16.gmra.mrb[0].mxu0 %v2138
        %v2197 = vpop.f32.mrb[0].mxu0
        %v2198 = vadd.f32 0.0, %v2197
        %v2199 = vpop.f32.mrb[0].mxu0
        %v2200 = vpop.f32.mrb[0].mxu0
        %v2201 = vadd.f32 0.0, %v2200
        %v2202 = vpop.f32.mrb[0].mxu0
        %2203 = vmatprep.mubr.bf16.mxu0 0
        %2204 = vmatmul.mubr.bf16.gmra.mrb[0].mxu0 %v2141
        %v2205 = vpop.f32.mrb[0].mxu0
        %v2206 = vadd.f32 0.0, %v2205
        %v2207 = vpop.f32.mrb[0].mxu0
        %v2208 = vpop.f32.mrb[0].mxu0
        %v2209 = vadd.f32 0.0, %v2208
        %v2210 = vpop.f32.mrb[0].mxu0
        %2211 = vmatprep.mubr.bf16.mxu0 0
        %2212 = vmatmul.mubr.bf16.gmra.mrb[0].mxu0 %v2144
        %v2213 = vpop.f32.mrb[0].mxu0
        %v2214 = vadd.f32 0.0, %v2213
        %v2215 = vpop.f32.mrb[0].mxu0
        %v2216 = vpop.f32.mrb[0].mxu0
        %v2217 = vadd.f32 0.0, %v2216
        %v2218 = vpop.f32.mrb[0].mxu0
        %2219 = vmatprep.mubr.bf16.mxu0 0
        %2220 = vmatmul.mubr.bf16.gmra.mrb[0].mxu0 %v2147
        %v2221 = vpop.f32.mrb[0].mxu0
        %v2222 = vadd.f32 0.0, %v2221
        %v2223 = vpop.f32.mrb[0].mxu0
        %v2224 = vpop.f32.mrb[0].mxu0
        %v2225 = vadd.f32 0.0, %v2224
        %v2226 = vpop.f32.mrb[0].mxu0
        %2227 = vmatprep.mubr.bf16.mxu0 0
        %2228 = vmatmul.mubr.bf16.gmra.mrb[0].mxu0 %v2150
        %v2229 = vpop.f32.mrb[0].mxu0
        %v2230 = vadd.f32 0.0, %v2229
        %v2231 = vpop.f32.mrb[0].mxu0
        %v2232 = vpop.f32.mrb[0].mxu0
        %v2233 = vadd.f32 0.0, %v2232
        %v2234 = vpop.f32.mrb[0].mxu0
        %2235 = vdwg.mxu0
        %v2236 = vld [vmem:[#allocation2] sm:$0xff]
        %v2237 = vld [vmem:[#allocation2 + $0x8] sm:$0xff]
        %v2238 = vld [vmem:[#allocation2 + $0x10] sm:$0xff]
        %v2239 = vld [vmem:[#allocation2 + $0x18] sm:$0xff]
        %v2240 = vld [vmem:[#allocation2 + $0x20] sm:$0xff]
        %v2241 = vld [vmem:[#allocation2 + $0x28] sm:$0xff]
        %v2242 = vld [vmem:[#allocation2 + $0x30] sm:$0xff]
        %v2243 = vld [vmem:[#allocation2 + $0x38] sm:$0xff]
        %v2244 = vld [vmem:[#allocation2 + $0x40] sm:$0xff]
        %v2245 = vld [vmem:[#allocation2 + $0x48] sm:$0xff]
        %v2246 = vld [vmem:[#allocation2 + $0x50] sm:$0xff]
        %v2247 = vld [vmem:[#allocation2 + $0x58] sm:$0xff]
        %v2248 = vadd.f32 %v2236, %v2190
        %v2249 = vadd.f32 %v2237, %v2193
        %v2250 = vadd.f32 %v2238, %v2198
        %v2251 = vadd.f32 %v2239, %v2201
        %v2252 = vadd.f32 %v2240, %v2206
        %v2253 = vadd.f32 %v2241, %v2209
        %v2254 = vadd.f32 %v2242, %v2214
        %v2255 = vadd.f32 %v2243, %v2217
        %v2256 = vadd.f32 %v2244, %v2222
        %v2257 = vadd.f32 %v2245, %v2225
        %v2258 = vadd.f32 %v2246, %v2230
        %v2259 = vadd.f32 %v2247, %v2233
        %2260 = vst [vmem:[#allocation2] sm:$0xff] %v2248
        %2261 = vst [vmem:[#allocation2 + $0x8] sm:$0xff] %v2249
        %2262 = vst [vmem:[#allocation2 + $0x10] sm:$0xff] %v2250
        %2263 = vst [vmem:[#allocation2 + $0x18] sm:$0xff] %v2251
        %2264 = vst [vmem:[#allocation2 + $0x20] sm:$0xff] %v2252
        %2265 = vst [vmem:[#allocation2 + $0x28] sm:$0xff] %v2253
        %2266 = vst [vmem:[#allocation2 + $0x30] sm:$0xff] %v2254
        %2267 = vst [vmem:[#allocation2 + $0x38] sm:$0xff] %v2255
        %2268 = vst [vmem:[#allocation2 + $0x40] sm:$0xff] %v2256
        %2269 = vst [vmem:[#allocation2 + $0x48] sm:$0xff] %v2257
        %2270 = vst [vmem:[#allocation2 + $0x50] sm:$0xff] %v2258
        %2271 = vst [vmem:[#allocation2 + $0x58] sm:$0xff] %v2259
        %v2272 = vld [vmem:[#allocation2] sm:$0xff]
        %v2273 = vld [vmem:[#allocation2 + $0x8] sm:$0xff]
        %v2274 = vld [vmem:[#allocation2 + $0x10] sm:$0xff]
        %v2275 = vld [vmem:[#allocation2 + $0x18] sm:$0xff]
        %v2276 = vld [vmem:[#allocation2 + $0x20] sm:$0xff]
        %v2277 = vld [vmem:[#allocation2 + $0x28] sm:$0xff]
        %v2278 = vld [vmem:[#allocation2 + $0x30] sm:$0xff]
        %v2279 = vld [vmem:[#allocation2 + $0x38] sm:$0xff]
        %v2280 = vld [vmem:[#allocation2 + $0x40] sm:$0xff]
        %v2281 = vld [vmem:[#allocation2 + $0x48] sm:$0xff]
        %v2282 = vld [vmem:[#allocation2 + $0x50] sm:$0xff]
        %v2283 = vld [vmem:[#allocation2 + $0x58] sm:$0xff]
        %v2284 = vld [vmem:[%s2] sm:$0x1]
        %v2286 = vlaneseq
        %v2287 = vshrl.u32 %v2286, 7
        %v2288 = vsub.s32 0, %v2287
        %v2289 = vrot.slane %v2284, %v2288
        %v2291 = vadd.f32 %v2272, %v2289
        %v2292 = vadd.f32 %v2273, %v2289
        %v2293 = vadd.f32 %v2274, %v2289
        %v2294 = vadd.f32 %v2275, %v2289
        %v2295 = vadd.f32 %v2276, %v2289
        %v2296 = vadd.f32 %v2277, %v2289
        %v2297 = vadd.f32 %v2278, %v2289
        %v2298 = vadd.f32 %v2279, %v2289
        %v2299 = vadd.f32 %v2280, %v2289
        %v2300 = vadd.f32 %v2281, %v2289
        %v2301 = vadd.f32 %v2282, %v2289
        %v2302 = vadd.f32 %v2283, %v2289
        %2303 = vst [vmem:[%s187] sm:$0xff] %v2291
        %2304 = vst [vmem:[%s187 + $0x8] sm:$0xff] %v2292
        %2305 = vst [vmem:[%s187 + $0x10] sm:$0xff] %v2293
        %2306 = vst [vmem:[%s187 + $0x18] sm:$0xff] %v2294
        %2307 = vst [vmem:[%s187 + $0x20] sm:$0xff] %v2295
        %2308 = vst [vmem:[%s187 + $0x28] sm:$0xff] %v2296
        %2309 = vst [vmem:[%s187 + $0x30] sm:$0xff] %v2297
        %2310 = vst [vmem:[%s187 + $0x38] sm:$0xff] %v2298
        %2311 = vst [vmem:[%s187 + $0x40] sm:$0xff] %v2299
        %2312 = vst [vmem:[%s187 + $0x48] sm:$0xff] %v2300
        %2313 = vst [vmem:[%s187 + $0x50] sm:$0xff] %v2301
        %2314 = vst [vmem:[%s187 + $0x58] sm:$0xff] %v2302
        %s2315 = sand.u32 %s111, 1
        %s2316 = scalar_lea.sflag [#allocation4], %s2315
        %s2317 = sand.u32 %s111, 1
        %s2318 = smul.addr %s2317, 96
        %s2319 = scalar_lea.vmem [#allocation3], %s2318
        // Predicated region
        $region33: #{tpu_custom_call.1} parent=31 // pred_check
          %p2320 = pneg %p121
        $region34: #{tpu_custom_call.1} parent=31 // pred_check_branch
          %2322 = sbr.rel (%p2320) target = $region36
        $region35: #{tpu_custom_call.1} parent=31 // pred_region
          %s2323 = smul.u32 6, %s22
          %s2325 = ssub.s32 1536, 1536
          %2326 = vsyncadd %s2316, %s2325
          %s2327 = smul.addr %s2323, 2
          %s2328 = smul.addr %s21, 36
          %s2329 = sadd.s32 %s2327, %s2328
          %s2330 = smul.addr %s2329, 128
          %s2331 = scalar_lea.hbm %s3, %s2330
          %s2332 = sshll.u32 %s2319, 4
          %s2333 = int_to_ptr.vmem [resolvable:$true] %s2332
          %2338 = dma.vmem_to_hbm [thread:$0]  %s2333, 1536, %s2331, %s2316, 128, 128, 8
        $region36: #{tpu_custom_call.1} parent=31 // pred_fallthru
          _
      $region32: #{tpu_custom_call.1} parent=5 // pred_fallthru
        _
      %p2339 = scmp.le.s32.totalorder 2, %s12
      // Predicated region
      $region37: #{tpu_custom_call.1} parent=5 // pred_check
        %p2340 = pneg %p2339
      $region38: #{tpu_custom_call.1} parent=5 // pred_check_branch
        %2342 = sbr.rel (%p2340) target = $region40
      $region39: #{tpu_custom_call.1} parent=5 // pred_region
        %s2343 = ssub.s32 %s12, 2
        // Predicated region
        $region41: #{tpu_custom_call.1} parent=39 // pred_check
          %p2344 = pneg %p127
        $region42: #{tpu_custom_call.1} parent=39 // pred_check_branch
          %2346 = sbr.rel (%p2344) target = $region44
        $region43: #{tpu_custom_call.1} parent=39 // pred_region
          %s2347 = sand.u32 %s112, 1
          %s2348 = scalar_lea.sflag [#allocation4], %s2347
          %s2349 = sand.u32 %s112, 1
          %s2350 = smul.addr %s2349, 96
          %s2351 = scalar_lea.vmem [#allocation3], %s2350
          %2352 = dma.done %s2348, 1536
        $region44: #{tpu_custom_call.1} parent=39 // pred_fallthru
          _
      $region40: #{tpu_custom_call.1} parent=5 // pred_fallthru
        _
    $region6: #{tpu_custom_call.1} parent=1 // loop_footer
      %s16 = sadd.s32 1, %s12
    $region7: #{tpu_custom_call.1} parent=1 // loop_footer_branch
      %11 = sbr.rel target = $region3
    $region8: #{tpu_custom_call.1} parent=1 // loop_exit
      _
    %2353 = vsyncpa [#allocation4], 1
    %s2354 = scalar_lea.sflag [#allocation4], 1
    %2355 = vsyncpa %s2354, 1

</llo_original>
